<compile_context>
chip_gen: v7x
topology: tpu7x:2x2x1
jax: 0.10.0
libtpu: 0.0.40
codegen_flags: <defaults>
</compile_context>

<pallas_src>
import functools

import jax
import jax.numpy as jnp
from jax.experimental import pallas as pl
from jax.experimental.pallas import tpu as pltpu

EPS = 1e-5


def _residual_block_kernel(GL, Wp, inv_nhw, compute_dtype,
                           xpad_ref, mask_ref,
                           w1_ref, g1_ref, be1_ref,
                           w2_ref, g2_ref, be2_ref,
                           o_ref, hpad_ref, patch_ref):
    C, NP = o_ref.shape
    # interior mask: 1.0 at real pixels, 0.0 on each image's padding ring.
    # Loaded once and reused by both convs (kept resident in vregs).
    mask = mask_ref[...]                              # (1, NP) float32

    def build_patches(src_ref):
        # src_ref: (C, GL + NP + GR) lane-guarded, spatially zero-padded
        # activation.  Each 3x3 tap is a static shifted window on the lane
        # axis; the per-row / per-image zero padding makes every tap read
        # real zeros, so no border masking is required.
        for kh in range(3):
            for kw in range(3):
                d = (kh - 1) * Wp + (kw - 1)
                t = kh * 3 + kw
                patch_ref[t * C:(t + 1) * C, :] = src_ref[:, GL + d:GL + d + NP]

    def conv_bn(w_ref, g_ref, be_ref):
        # one fused im2col matmul on the MXU: (C, 9C) @ (9C, NP) -> (C, NP)
        # (conv bias intentionally omitted: cancelled by batch-stat BN)
        acc = jnp.dot(w_ref[...], patch_ref[...].astype(compute_dtype),
                      preferred_element_type=jnp.float32)
        # single-pass BN statistics over the N*H*W interior positions only
        am = acc * mask
        s1 = jnp.sum(am, axis=1, keepdims=True)
        s2 = jnp.sum(am * acc, axis=1, keepdims=True)
        mean = s1 * inv_nhw
        var = jnp.maximum(s2 * inv_nhw - mean * mean, 0.0)
        scale = jax.lax.rsqrt(var + EPS) * g_ref[...]
        return (acc - mean) * scale + be_ref[...]

    # ---- conv1 -> bn1 -> relu; mask restores exact zeros on the pad ring ----
    build_patches(xpad_ref)
    h1 = jnp.maximum(conv_bn(w1_ref, g1_ref, be1_ref), 0.0) * mask

    # ---- stage h1 into the guarded scratch: only the two 128-lane guards are
    #      zero-filled, the interior store is lane-aligned at offset GL ----
    hpad_ref[:, :GL] = jnp.zeros((C, GL), jnp.float32)
    hpad_ref[:, GL + NP:] = jnp.zeros((C, hpad_ref.shape[1] - GL - NP),
                                      jnp.float32)
    hpad_ref[:, GL:GL + NP] = h1

    # ---- conv2 -> bn2 -> +residual -> relu ----
    build_patches(hpad_ref)
    h2 = conv_bn(w2_ref, g2_ref, be2_ref) + xpad_ref[:, GL:GL + NP]
    o_ref[...] = jnp.maximum(h2, 0.0).astype(o_ref.dtype)


def residual_block(x_nchw, params, compute_dtype=jnp.float32):
    """Forward pass of ResidualBlock (training-mode BN, downsample=None).

    x_nchw: (N, C, H, W) float32 (PyTorch layout).
    params: (w1, b1, g1, be1, w2, b2, g2, be2) in PyTorch layouts:
        conv weights (Cout, Cin, 3, 3), conv biases (Cout,), BN gamma/beta (Cout,).
    compute_dtype: dtype of the MXU matmul operands (float32 or bfloat16);
        accumulation, BN statistics and the residual path are always float32.
    """
    w1, b1, g1, be1, w2, b2, g2, be2 = params
    N, Cin, H, W = x_nchw.shape
    Cout = w1.shape[0]
    assert Cin == Cout, "downsample=None requires in_channels == out_channels"
    Hp, Wp = H + 2, W + 2
    NP = N * Hp * Wp                       # padded, flattened spatial extent
    GL = GR = 128                          # lane-aligned guards for tap shifts
    assert GL >= Wp + 1 and GR >= Wp + 1

    # lane-dense, spatially zero-padded layout: (C, N*(H+2)*(W+2)) + guards
    xp = jnp.pad(x_nchw, ((0, 0), (0, 0), (1, 1), (1, 1)))
    xcf = jnp.transpose(xp, (1, 0, 2, 3)).reshape(Cin, NP)
    xpad = jnp.pad(xcf, ((0, 0), (GL, GR)))

    # interior mask (1 at real pixels, 0 on each image's padding ring)
    mask = jnp.pad(jnp.ones((N, H, W), jnp.float32),
                   ((0, 0), (1, 1), (1, 1))).reshape(1, NP)

    # (Cout, Cin, 3, 3) OIHW -> (Cout, 9*Cin); K index = (kh*3 + kw)*Cin + ci
    def repack(w):
        return (jnp.transpose(w, (0, 2, 3, 1))
                .reshape(w.shape[0], -1).astype(compute_dtype))
    w1k, w2k = repack(w1), repack(w2)

    # conv biases are NOT passed to the kernel: with training-mode BatchNorm a
    # per-channel constant added before the BN cancels under mean subtraction.
    del b1, b2

    g1c, be1c = g1.reshape(Cout, 1), be1.reshape(Cout, 1)
    g2c, be2c = g2.reshape(Cout, 1), be2.reshape(Cout, 1)

    vmem = pl.BlockSpec(memory_space=pltpu.MemorySpace.VMEM)
    out_flat = pl.pallas_call(
        functools.partial(_residual_block_kernel,
                          GL, Wp, 1.0 / float(N * H * W), compute_dtype),
        out_shape=jax.ShapeDtypeStruct((Cout, NP), x_nchw.dtype),
        in_specs=[vmem] * 8,
        out_specs=vmem,
        scratch_shapes=[
            pltpu.VMEM((Cout, GL + NP + GR), jnp.float32),   # guarded h1
            pltpu.VMEM((9 * Cin, NP), jnp.float32),          # im2col patches
        ],
        compiler_params=pltpu.CompilerParams(
            vmem_limit_bytes=16 * 1024 * 1024),
    )(xpad, mask, w1k, g1c, be1c, w2k, g2c, be2c)

    # drop the padding ring and return to (N, C, H, W)
    out = out_flat.reshape(Cout, N, Hp, Wp)[:, :, 1:H + 1, 1:W + 1]
    return jnp.transpose(out, (1, 0, 2, 3))


def reference_block(x_nchw, params):
    """Pure-JAX reference (lax.conv, with conv biases) for correctness."""
    w1, b1, g1, be1, w2, b2, g2, be2 = params
    x = jnp.transpose(x_nchw, (0, 2, 3, 1))          # NHWC

    def conv(inp, w_oihw, b):
        w_hwio = jnp.transpose(w_oihw, (2, 3, 1, 0))
        y = jax.lax.conv_general_dilated(
            inp, w_hwio, window_strides=(1, 1), padding="SAME",
            dimension_numbers=("NHWC", "HWIO", "NHWC"))
        return y + b.reshape(1, 1, 1, -1)

    def bn(y, g, be):
        m = jnp.mean(y, axis=(0, 1, 2), keepdims=True)
        v = jnp.mean((y - m) ** 2, axis=(0, 1, 2), keepdims=True)
        return (y - m) * jax.lax.rsqrt(v + EPS) * g.reshape(1, 1, 1, -1) \
               + be.reshape(1, 1, 1, -1)

    h = jnp.maximum(bn(conv(x, w1, b1), g1, be1), 0.0)
    out = jnp.maximum(bn(conv(h, w2, b2), g2, be2) + x, 0.0)
    return jnp.transpose(out, (0, 3, 1, 2))


if __name__ == "__main__":
    # small shapes consistent with the module: N=2, C=4, H=W=16, stride=1,
    # downsample=None (so in_channels == out_channels).
    N, C, H, W = 2, 4, 16, 16
    key = jax.random.PRNGKey(0)
    kx, kw1, kb1, kw2, kb2 = jax.random.split(key, 5)

    x = jax.random.normal(kx, (N, C, H, W), dtype=jnp.float32)

    # PyTorch-layout parameters (conv weights OIHW, biases/BN params (C,))
    w1 = jax.random.normal(kw1, (C, C, 3, 3), dtype=jnp.float32) * 0.1
    b1 = jax.random.normal(kb1, (C,), dtype=jnp.float32) * 0.1
    g1 = jnp.ones((C,), dtype=jnp.float32)
    be1 = jnp.zeros((C,), dtype=jnp.float32)
    w2 = jax.random.normal(kw2, (C, C, 3, 3), dtype=jnp.float32) * 0.1
    b2 = jax.random.normal(kb2, (C,), dtype=jnp.float32) * 0.1
    g2 = jnp.ones((C,), dtype=jnp.float32)
    be2 = jnp.zeros((C,), dtype=jnp.float32)
    params = (w1, b1, g1, be1, w2, b2, g2, be2)

    ref = jax.block_until_ready(reference_block(x, params))

    # strict check with float32 matmul operands
    out = jax.block_until_ready(residual_block(x, params, jnp.float32))
    assert out.shape == (N, C, H, W)
    err = float(jnp.max(jnp.abs(out - ref)))
    assert jnp.allclose(out, ref, atol=1e-4, rtol=1e-4), f"f32 max abs err {err}"

    # bfloat16 matmul-operand path (MXU-native; production setting) --
    # loose sanity tolerance accounts for bf16 operand rounding only.
    out_bf = jax.block_until_ready(residual_block(x, params, jnp.bfloat16))
    err_bf = float(jnp.max(jnp.abs(out_bf - ref)))
    assert jnp.allclose(out_bf, ref, atol=1e-1, rtol=1e-1), \
        f"bf16 max abs err {err_bf}"

    print("KERNEL_OK")
</pallas_src>

<mosaic_0001>
module attributes {stable_mosaic.version = 11 : i64} {
  func.func @_residual_block_kernel(%arg0: memref<4x904xf32, #tpu.memory_space<vmem>>, %arg1: memref<1x648xf32, #tpu.memory_space<vmem>>, %arg2: memref<4x36xf32, #tpu.memory_space<vmem>>, %arg3: memref<4x1xf32, #tpu.memory_space<vmem>>, %arg4: memref<4x1xf32, #tpu.memory_space<vmem>>, %arg5: memref<4x36xf32, #tpu.memory_space<vmem>>, %arg6: memref<4x1xf32, #tpu.memory_space<vmem>>, %arg7: memref<4x1xf32, #tpu.memory_space<vmem>>, %arg8: memref<4x648xf32, #tpu.memory_space<vmem>>, %arg9: memref<4x904xf32, #tpu.memory_space<vmem>>, %arg10: memref<36x648xf32, #tpu.memory_space<vmem>>) attributes {dimension_semantics = [], scalar_prefetch = 0 : i64, scratch_operands = 2 : i64, tpu.core_type = #tpu.core_type<tc>} {
    %c0 = arith.constant 0 : index
    %c0_0 = arith.constant 0 : index
    %0 = vector.load %arg1[%c0, %c0_0] : memref<1x648xf32, #tpu.memory_space<vmem>>, vector<1x648xf32>
    %c0_1 = arith.constant 0 : index
    %c109 = arith.constant 109 : index
    %1 = vector.load %arg0[%c0_1, %c109] : memref<4x904xf32, #tpu.memory_space<vmem>>, vector<4x648xf32>
    %c0_2 = arith.constant 0 : index
    %c0_3 = arith.constant 0 : index
    %2 = vector.load %arg10[%c0_2, %c0_3] : memref<36x648xf32, #tpu.memory_space<vmem>>, vector<4x648xf32>
    tpu.vector_store %arg10[%c0_2, %c0_3], %1 {strides = array<i32>} : memref<36x648xf32, #tpu.memory_space<vmem>>, vector<4x648xf32>,
    %c0_4 = arith.constant 0 : index
    %c110 = arith.constant 110 : index
    %3 = vector.load %arg0[%c0_4, %c110] : memref<4x904xf32, #tpu.memory_space<vmem>>, vector<4x648xf32>
    %c4 = arith.constant 4 : index
    %c0_5 = arith.constant 0 : index
    %4 = vector.load %arg10[%c4, %c0_5] : memref<36x648xf32, #tpu.memory_space<vmem>>, vector<4x648xf32>
    tpu.vector_store %arg10[%c4, %c0_5], %3 {strides = array<i32>} : memref<36x648xf32, #tpu.memory_space<vmem>>, vector<4x648xf32>,
    %c0_6 = arith.constant 0 : index
    %c111 = arith.constant 111 : index
    %5 = vector.load %arg0[%c0_6, %c111] : memref<4x904xf32, #tpu.memory_space<vmem>>, vector<4x648xf32>
    %c8 = arith.constant 8 : index
    %c0_7 = arith.constant 0 : index
    %6 = vector.load %arg10[%c8, %c0_7] : memref<36x648xf32, #tpu.memory_space<vmem>>, vector<4x648xf32>
    tpu.vector_store %arg10[%c8, %c0_7], %5 {strides = array<i32>} : memref<36x648xf32, #tpu.memory_space<vmem>>, vector<4x648xf32>,
    %c0_8 = arith.constant 0 : index
    %c127 = arith.constant 127 : index
    %7 = vector.load %arg0[%c0_8, %c127] : memref<4x904xf32, #tpu.memory_space<vmem>>, vector<4x648xf32>
    %c12 = arith.constant 12 : index
    %c0_9 = arith.constant 0 : index
    %8 = vector.load %arg10[%c12, %c0_9] : memref<36x648xf32, #tpu.memory_space<vmem>>, vector<4x648xf32>
    tpu.vector_store %arg10[%c12, %c0_9], %7 {strides = array<i32>} : memref<36x648xf32, #tpu.memory_space<vmem>>, vector<4x648xf32>,
    %c0_10 = arith.constant 0 : index
    %c128 = arith.constant 128 : index
    %9 = vector.load %arg0[%c0_10, %c128] : memref<4x904xf32, #tpu.memory_space<vmem>>, vector<4x648xf32>
    %c16 = arith.constant 16 : index
    %c0_11 = arith.constant 0 : index
    %10 = vector.load %arg10[%c16, %c0_11] : memref<36x648xf32, #tpu.memory_space<vmem>>, vector<4x648xf32>
    tpu.vector_store %arg10[%c16, %c0_11], %9 {strides = array<i32>} : memref<36x648xf32, #tpu.memory_space<vmem>>, vector<4x648xf32>,
    %c0_12 = arith.constant 0 : index
    %c129 = arith.constant 129 : index
    %11 = vector.load %arg0[%c0_12, %c129] : memref<4x904xf32, #tpu.memory_space<vmem>>, vector<4x648xf32>
    %c20 = arith.constant 20 : index
    %c0_13 = arith.constant 0 : index
    %12 = vector.load %arg10[%c20, %c0_13] : memref<36x648xf32, #tpu.memory_space<vmem>>, vector<4x648xf32>
    tpu.vector_store %arg10[%c20, %c0_13], %11 {strides = array<i32>} : memref<36x648xf32, #tpu.memory_space<vmem>>, vector<4x648xf32>,
    %c0_14 = arith.constant 0 : index
    %c145 = arith.constant 145 : index
    %13 = vector.load %arg0[%c0_14, %c145] : memref<4x904xf32, #tpu.memory_space<vmem>>, vector<4x648xf32>
    %c24 = arith.constant 24 : index
    %c0_15 = arith.constant 0 : index
    %14 = vector.load %arg10[%c24, %c0_15] : memref<36x648xf32, #tpu.memory_space<vmem>>, vector<4x648xf32>
    tpu.vector_store %arg10[%c24, %c0_15], %13 {strides = array<i32>} : memref<36x648xf32, #tpu.memory_space<vmem>>, vector<4x648xf32>,
    %c0_16 = arith.constant 0 : index
    %c146 = arith.constant 146 : index
    %15 = vector.load %arg0[%c0_16, %c146] : memref<4x904xf32, #tpu.memory_space<vmem>>, vector<4x648xf32>
    %c28 = arith.constant 28 : index
    %c0_17 = arith.constant 0 : index
    %16 = vector.load %arg10[%c28, %c0_17] : memref<36x648xf32, #tpu.memory_space<vmem>>, vector<4x648xf32>
    tpu.vector_store %arg10[%c28, %c0_17], %15 {strides = array<i32>} : memref<36x648xf32, #tpu.memory_space<vmem>>, vector<4x648xf32>,
    %c0_18 = arith.constant 0 : index
    %c147 = arith.constant 147 : index
    %17 = vector.load %arg0[%c0_18, %c147] : memref<4x904xf32, #tpu.memory_space<vmem>>, vector<4x648xf32>
    %c32 = arith.constant 32 : index
    %c0_19 = arith.constant 0 : index
    %18 = vector.load %arg10[%c32, %c0_19] : memref<36x648xf32, #tpu.memory_space<vmem>>, vector<4x648xf32>
    tpu.vector_store %arg10[%c32, %c0_19], %17 {strides = array<i32>} : memref<36x648xf32, #tpu.memory_space<vmem>>, vector<4x648xf32>,
    %c0_20 = arith.constant 0 : index
    %c0_21 = arith.constant 0 : index
    %19 = vector.load %arg2[%c0_20, %c0_21] : memref<4x36xf32, #tpu.memory_space<vmem>>, vector<4x36xf32>
    %c0_22 = arith.constant 0 : index
    %c0_23 = arith.constant 0 : index
    %20 = vector.load %arg10[%c0_22, %c0_23] : memref<36x648xf32, #tpu.memory_space<vmem>>, vector<36x648xf32>
    %cst = arith.constant dense<0.000000e+00> : vector<4x648xf32>
    %21 = tpu.matmul %19, %20, %cst {dimension_numbers = #tpu.dot_dimension_numbers<[1], [0], [0], [1], [0, 0, 1, 1], [], []>} : vector<4x36xf32>, vector<36x648xf32>, vector<4x648xf32> -> vector<4x648xf32>
    %22 = vector.broadcast %0 : vector<1x648xf32> to vector<4x648xf32>
    %23 = arith.mulf %21, %22 : vector<4x648xf32>
    %cst_24 = arith.constant dense<0.000000e+00> : vector<4xf32>
    %24 = vector.multi_reduction <add>, %23, %cst_24 [1] : vector<4x648xf32> to vector<4xf32>
    %25 = vector.shape_cast %24 : vector<4xf32> to vector<4x1xf32>
    %26 = arith.mulf %23, %21 : vector<4x648xf32>
    %cst_25 = arith.constant dense<0.000000e+00> : vector<4xf32>
    %27 = vector.multi_reduction <add>, %26, %cst_25 [1] : vector<4x648xf32> to vector<4xf32>
    %28 = vector.shape_cast %27 : vector<4xf32> to vector<4x1xf32>
    %cst_26 = arith.constant 0.001953125 : f32
    %29 = vector.broadcast %cst_26 : f32 to vector<4x1xf32>
    %30 = arith.mulf %25, %29 : vector<4x1xf32>
    %cst_27 = arith.constant 0.001953125 : f32
    %31 = vector.broadcast %cst_27 : f32 to vector<4x1xf32>
    %32 = arith.mulf %28, %31 : vector<4x1xf32>
    %33 = arith.mulf %30, %30 : vector<4x1xf32>
    %34 = arith.subf %32, %33 : vector<4x1xf32>
    %cst_28 = arith.constant 0.000000e+00 : f32
    %35 = vector.broadcast %cst_28 : f32 to vector<4x1xf32>
    %36 = arith.maximumf %34, %35 : vector<4x1xf32>
    %cst_29 = arith.constant 9.99999974E-6 : f32
    %37 = vector.broadcast %cst_29 : f32 to vector<4x1xf32>
    %38 = arith.addf %36, %37 : vector<4x1xf32>
    %39 = math.rsqrt %38 : vector<4x1xf32>
    %c0_30 = arith.constant 0 : index
    %c0_31 = arith.constant 0 : index
    %40 = vector.load %arg3[%c0_30, %c0_31] : memref<4x1xf32, #tpu.memory_space<vmem>>, vector<4x1xf32>
    %41 = arith.mulf %39, %40 : vector<4x1xf32>
    %42 = vector.broadcast %30 : vector<4x1xf32> to vector<4x648xf32>
    %43 = arith.subf %21, %42 : vector<4x648xf32>
    %44 = vector.broadcast %41 : vector<4x1xf32> to vector<4x648xf32>
    %45 = arith.mulf %43, %44 : vector<4x648xf32>
    %c0_32 = arith.constant 0 : index
    %c0_33 = arith.constant 0 : index
    %46 = vector.load %arg4[%c0_32, %c0_33] : memref<4x1xf32, #tpu.memory_space<vmem>>, vector<4x1xf32>
    %47 = vector.broadcast %46 : vector<4x1xf32> to vector<4x648xf32>
    %48 = arith.addf %45, %47 : vector<4x648xf32>
    %cst_34 = arith.constant 0.000000e+00 : f32
    %49 = vector.broadcast %cst_34 : f32 to vector<4x648xf32>
    %50 = arith.maximumf %48, %49 : vector<4x648xf32>
    %51 = vector.broadcast %0 : vector<1x648xf32> to vector<4x648xf32>
    %52 = arith.mulf %50, %51 : vector<4x648xf32>
    %cst_35 = arith.constant 0.000000e+00 : f32
    %53 = vector.broadcast %cst_35 : f32 to vector<4x128xf32>
    %c0_36 = arith.constant 0 : index
    %c0_37 = arith.constant 0 : index
    %54 = vector.load %arg9[%c0_36, %c0_37] : memref<4x904xf32, #tpu.memory_space<vmem>>, vector<4x128xf32>
    tpu.vector_store %arg9[%c0_36, %c0_37], %53 {strides = array<i32>} : memref<4x904xf32, #tpu.memory_space<vmem>>, vector<4x128xf32>,
    %cst_38 = arith.constant 0.000000e+00 : f32
    %55 = vector.broadcast %cst_38 : f32 to vector<4x128xf32>
    %c0_39 = arith.constant 0 : index
    %c776 = arith.constant 776 : index
    %56 = vector.load %arg9[%c0_39, %c776] : memref<4x904xf32, #tpu.memory_space<vmem>>, vector<4x128xf32>
    tpu.vector_store %arg9[%c0_39, %c776], %55 {strides = array<i32>} : memref<4x904xf32, #tpu.memory_space<vmem>>, vector<4x128xf32>,
    %c0_40 = arith.constant 0 : index
    %c128_41 = arith.constant 128 : index
    %57 = vector.load %arg9[%c0_40, %c128_41] : memref<4x904xf32, #tpu.memory_space<vmem>>, vector<4x648xf32>
    tpu.vector_store %arg9[%c0_40, %c128_41], %52 {strides = array<i32>} : memref<4x904xf32, #tpu.memory_space<vmem>>, vector<4x648xf32>,
    %c0_42 = arith.constant 0 : index
    %c109_43 = arith.constant 109 : index
    %58 = vector.load %arg9[%c0_42, %c109_43] : memref<4x904xf32, #tpu.memory_space<vmem>>, vector<4x648xf32>
    %c0_44 = arith.constant 0 : index
    %c0_45 = arith.constant 0 : index
    %59 = vector.load %arg10[%c0_44, %c0_45] : memref<36x648xf32, #tpu.memory_space<vmem>>, vector<4x648xf32>
    tpu.vector_store %arg10[%c0_44, %c0_45], %58 {strides = array<i32>} : memref<36x648xf32, #tpu.memory_space<vmem>>, vector<4x648xf32>,
    %c0_46 = arith.constant 0 : index
    %c110_47 = arith.constant 110 : index
    %60 = vector.load %arg9[%c0_46, %c110_47] : memref<4x904xf32, #tpu.memory_space<vmem>>, vector<4x648xf32>
    %c4_48 = arith.constant 4 : index
    %c0_49 = arith.constant 0 : index
    %61 = vector.load %arg10[%c4_48, %c0_49] : memref<36x648xf32, #tpu.memory_space<vmem>>, vector<4x648xf32>
    tpu.vector_store %arg10[%c4_48, %c0_49], %60 {strides = array<i32>} : memref<36x648xf32, #tpu.memory_space<vmem>>, vector<4x648xf32>,
    %c0_50 = arith.constant 0 : index
    %c111_51 = arith.constant 111 : index
    %62 = vector.load %arg9[%c0_50, %c111_51] : memref<4x904xf32, #tpu.memory_space<vmem>>, vector<4x648xf32>
    %c8_52 = arith.constant 8 : index
    %c0_53 = arith.constant 0 : index
    %63 = vector.load %arg10[%c8_52, %c0_53] : memref<36x648xf32, #tpu.memory_space<vmem>>, vector<4x648xf32>
    tpu.vector_store %arg10[%c8_52, %c0_53], %62 {strides = array<i32>} : memref<36x648xf32, #tpu.memory_space<vmem>>, vector<4x648xf32>,
    %c0_54 = arith.constant 0 : index
    %c127_55 = arith.constant 127 : index
    %64 = vector.load %arg9[%c0_54, %c127_55] : memref<4x904xf32, #tpu.memory_space<vmem>>, vector<4x648xf32>
    %c12_56 = arith.constant 12 : index
    %c0_57 = arith.constant 0 : index
    %65 = vector.load %arg10[%c12_56, %c0_57] : memref<36x648xf32, #tpu.memory_space<vmem>>, vector<4x648xf32>
    tpu.vector_store %arg10[%c12_56, %c0_57], %64 {strides = array<i32>} : memref<36x648xf32, #tpu.memory_space<vmem>>, vector<4x648xf32>,
    %c0_58 = arith.constant 0 : index
    %c128_59 = arith.constant 128 : index
    %66 = vector.load %arg9[%c0_58, %c128_59] : memref<4x904xf32, #tpu.memory_space<vmem>>, vector<4x648xf32>
    %c16_60 = arith.constant 16 : index
    %c0_61 = arith.constant 0 : index
    %67 = vector.load %arg10[%c16_60, %c0_61] : memref<36x648xf32, #tpu.memory_space<vmem>>, vector<4x648xf32>
    tpu.vector_store %arg10[%c16_60, %c0_61], %66 {strides = array<i32>} : memref<36x648xf32, #tpu.memory_space<vmem>>, vector<4x648xf32>,
    %c0_62 = arith.constant 0 : index
    %c129_63 = arith.constant 129 : index
    %68 = vector.load %arg9[%c0_62, %c129_63] : memref<4x904xf32, #tpu.memory_space<vmem>>, vector<4x648xf32>
    %c20_64 = arith.constant 20 : index
    %c0_65 = arith.constant 0 : index
    %69 = vector.load %arg10[%c20_64, %c0_65] : memref<36x648xf32, #tpu.memory_space<vmem>>, vector<4x648xf32>
    tpu.vector_store %arg10[%c20_64, %c0_65], %68 {strides = array<i32>} : memref<36x648xf32, #tpu.memory_space<vmem>>, vector<4x648xf32>,
    %c0_66 = arith.constant 0 : index
    %c145_67 = arith.constant 145 : index
    %70 = vector.load %arg9[%c0_66, %c145_67] : memref<4x904xf32, #tpu.memory_space<vmem>>, vector<4x648xf32>
    %c24_68 = arith.constant 24 : index
    %c0_69 = arith.constant 0 : index
    %71 = vector.load %arg10[%c24_68, %c0_69] : memref<36x648xf32, #tpu.memory_space<vmem>>, vector<4x648xf32>
    tpu.vector_store %arg10[%c24_68, %c0_69], %70 {strides = array<i32>} : memref<36x648xf32, #tpu.memory_space<vmem>>, vector<4x648xf32>,
    %c0_70 = arith.constant 0 : index
    %c146_71 = arith.constant 146 : index
    %72 = vector.load %arg9[%c0_70, %c146_71] : memref<4x904xf32, #tpu.memory_space<vmem>>, vector<4x648xf32>
    %c28_72 = arith.constant 28 : index
    %c0_73 = arith.constant 0 : index
    %73 = vector.load %arg10[%c28_72, %c0_73] : memref<36x648xf32, #tpu.memory_space<vmem>>, vector<4x648xf32>
    tpu.vector_store %arg10[%c28_72, %c0_73], %72 {strides = array<i32>} : memref<36x648xf32, #tpu.memory_space<vmem>>, vector<4x648xf32>,
    %c0_74 = arith.constant 0 : index
    %c147_75 = arith.constant 147 : index
    %74 = vector.load %arg9[%c0_74, %c147_75] : memref<4x904xf32, #tpu.memory_space<vmem>>, vector<4x648xf32>
    %c32_76 = arith.constant 32 : index
    %c0_77 = arith.constant 0 : index
    %75 = vector.load %arg10[%c32_76, %c0_77] : memref<36x648xf32, #tpu.memory_space<vmem>>, vector<4x648xf32>
    tpu.vector_store %arg10[%c32_76, %c0_77], %74 {strides = array<i32>} : memref<36x648xf32, #tpu.memory_space<vmem>>, vector<4x648xf32>,
    %c0_78 = arith.constant 0 : index
    %c0_79 = arith.constant 0 : index
    %76 = vector.load %arg5[%c0_78, %c0_79] : memref<4x36xf32, #tpu.memory_space<vmem>>, vector<4x36xf32>
    %c0_80 = arith.constant 0 : index
    %c0_81 = arith.constant 0 : index
    %77 = vector.load %arg10[%c0_80, %c0_81] : memref<36x648xf32, #tpu.memory_space<vmem>>, vector<36x648xf32>
    %cst_82 = arith.constant dense<0.000000e+00> : vector<4x648xf32>
    %78 = tpu.matmul %76, %77, %cst_82 {dimension_numbers = #tpu.dot_dimension_numbers<[1], [0], [0], [1], [0, 0, 1, 1], [], []>} : vector<4x36xf32>, vector<36x648xf32>, vector<4x648xf32> -> vector<4x648xf32>
    %79 = vector.broadcast %0 : vector<1x648xf32> to vector<4x648xf32>
    %80 = arith.mulf %78, %79 : vector<4x648xf32>
    %cst_83 = arith.constant dense<0.000000e+00> : vector<4xf32>
    %81 = vector.multi_reduction <add>, %80, %cst_83 [1] : vector<4x648xf32> to vector<4xf32>
    %82 = vector.shape_cast %81 : vector<4xf32> to vector<4x1xf32>
    %83 = arith.mulf %80, %78 : vector<4x648xf32>
    %cst_84 = arith.constant dense<0.000000e+00> : vector<4xf32>
    %84 = vector.multi_reduction <add>, %83, %cst_84 [1] : vector<4x648xf32> to vector<4xf32>
    %85 = vector.shape_cast %84 : vector<4xf32> to vector<4x1xf32>
    %cst_85 = arith.constant 0.001953125 : f32
    %86 = vector.broadcast %cst_85 : f32 to vector<4x1xf32>
    %87 = arith.mulf %82, %86 : vector<4x1xf32>
    %cst_86 = arith.constant 0.001953125 : f32
    %88 = vector.broadcast %cst_86 : f32 to vector<4x1xf32>
    %89 = arith.mulf %85, %88 : vector<4x1xf32>
    %90 = arith.mulf %87, %87 : vector<4x1xf32>
    %91 = arith.subf %89, %90 : vector<4x1xf32>
    %cst_87 = arith.constant 0.000000e+00 : f32
    %92 = vector.broadcast %cst_87 : f32 to vector<4x1xf32>
    %93 = arith.maximumf %91, %92 : vector<4x1xf32>
    %cst_88 = arith.constant 9.99999974E-6 : f32
    %94 = vector.broadcast %cst_88 : f32 to vector<4x1xf32>
    %95 = arith.addf %93, %94 : vector<4x1xf32>
    %96 = math.rsqrt %95 : vector<4x1xf32>
    %c0_89 = arith.constant 0 : index
    %c0_90 = arith.constant 0 : index
    %97 = vector.load %arg6[%c0_89, %c0_90] : memref<4x1xf32, #tpu.memory_space<vmem>>, vector<4x1xf32>
    %98 = arith.mulf %96, %97 : vector<4x1xf32>
    %99 = vector.broadcast %87 : vector<4x1xf32> to vector<4x648xf32>
    %100 = arith.subf %78, %99 : vector<4x648xf32>
    %101 = vector.broadcast %98 : vector<4x1xf32> to vector<4x648xf32>
    %102 = arith.mulf %100, %101 : vector<4x648xf32>
    %c0_91 = arith.constant 0 : index
    %c0_92 = arith.constant 0 : index
    %103 = vector.load %arg7[%c0_91, %c0_92] : memref<4x1xf32, #tpu.memory_space<vmem>>, vector<4x1xf32>
    %104 = vector.broadcast %103 : vector<4x1xf32> to vector<4x648xf32>
    %105 = arith.addf %102, %104 : vector<4x648xf32>
    %c0_93 = arith.constant 0 : index
    %c128_94 = arith.constant 128 : index
    %106 = vector.load %arg0[%c0_93, %c128_94] : memref<4x904xf32, #tpu.memory_space<vmem>>, vector<4x648xf32>
    %107 = arith.addf %105, %106 : vector<4x648xf32>
    %cst_95 = arith.constant 0.000000e+00 : f32
    %108 = vector.broadcast %cst_95 : f32 to vector<4x648xf32>
    %109 = arith.maximumf %107, %108 : vector<4x648xf32>
    %c0_96 = arith.constant 0 : index
    %c0_97 = arith.constant 0 : index
    %110 = vector.load %arg8[%c0_96, %c0_97] : memref<4x648xf32, #tpu.memory_space<vmem>>, vector<4x648xf32>
    tpu.vector_store %arg8[%c0_96, %c0_97], %109 {strides = array<i32>} : memref<4x648xf32, #tpu.memory_space<vmem>>, vector<4x648xf32>,
    return
  }
}

</mosaic_0001>

<llo_original>
// kernel: tpu_custom_call.1
$region0: #{tpu_custom_call.1}
  #allocation0 [shape = 'u32[]', space=smem, size = 0x4, offset = 0x4, fixed_abs, tag = 'smem constant byte address 0x4 - core index']
  #allocation1 [shape = 'u32[144,128]{1,0:T(1,128)}', space=vmem, size = 0x12000, scoped, tag = 'internal scratch']
  #allocation2 [shape = 'f32[4,904]{1,0:T(4,128)}', space=vmem, size = 0x4000, scoped, tag = 'scratch operand']
  #allocation3 [shape = 'f32[36,648]{1,0:T(8,128)}', space=vmem, size = 0x1e000, scoped, tag = 'scratch operand']
  %s0 = inlined_call_operand.hbm [shape: f32[4,904], index: 0, kind: input, shape index: {}]
  %s1 = inlined_call_operand.vmem [shape: f32[1,648], index: 1, kind: input, shape index: {}]
  %s2 = inlined_call_operand.vmem [shape: f32[4,36], index: 2, kind: input, shape index: {}]
  %s3 = inlined_call_operand.vmem [shape: f32[4,1], index: 3, kind: input, shape index: {}]
  %s4 = inlined_call_operand.vmem [shape: f32[4,1], index: 4, kind: input, shape index: {}]
  %s5 = inlined_call_operand.vmem [shape: f32[4,36], index: 5, kind: input, shape index: {}]
  %s6 = inlined_call_operand.vmem [shape: f32[4,1], index: 6, kind: input, shape index: {}]
  %s7 = inlined_call_operand.vmem [shape: f32[4,1], index: 7, kind: input, shape index: {}]
  %s8 = inlined_call_operand.hbm [shape: f32[4,648], index: 8, kind: output, shape index: {}]
  %s9 = sld [smem:[#allocation0]]
  $region46: #{tpu_custom_call.1} parent=0
    _
  %s11 = ssub.s32 1, %s9
  %s12 = scalar_select 0, %s11, %s9
  $region1: #{tpu_custom_call.1} parent=0
    #allocation4 [shape = 'u8[16384]{0}', space=vmem, size = 0x4000, scoped, tag = 'input window, operand 0, single buffered']
    #allocation5 [shape = 's32[1]{0}', space=sflag, size = 0x4, scoped, tag = 'scoped memory for tpu_custom_call.1']
    #allocation6 [shape = 's32[1]{0}', space=sflag, size = 0x4, scoped, tag = 'scoped memory for tpu_custom_call.1']
    #allocation7 [shape = 'u8[12288]{0}', space=vmem, size = 0x3000, scoped, tag = 'output window, operand 0, single buffered']
    %13 = vsyncpa [#allocation5], 0
    %14 = vsyncpa [#allocation6], 0
    // Predicated region
    $region2: #{tpu_custom_call.1} parent=1 // pred_check
      _
    $region3: #{tpu_custom_call.1} parent=1 // pred_check_branch
      %16 = sbr.rel (0) target = $region5
    $region4: #{tpu_custom_call.1} parent=1 // pred_region
      %s18 = ssub.s32 512, 512
      %19 = vsyncadd [#allocation5], %s18
      %s21 = sshll.u32 [#allocation4], 4
      %s22 = int_to_ptr.vmem [resolvable:$true] %s21
      %24 = dma.hbm_to_vmem [thread:$0]  %s0, 512, %s22, [#allocation5]
    $region5: #{tpu_custom_call.1} parent=1 // pred_fallthru
      _
    // Predicated region
    $region6: #{tpu_custom_call.1} parent=1 // pred_check
      _
    $region7: #{tpu_custom_call.1} parent=1 // pred_check_branch
      %26 = sbr.rel (0) target = $region9
    $region8: #{tpu_custom_call.1} parent=1 // pred_region
      _
    $region9: #{tpu_custom_call.1} parent=1 // pred_fallthru
      _
    // Predicated region
    $region10: #{tpu_custom_call.1} parent=1 // pred_check
      _
    $region11: #{tpu_custom_call.1} parent=1 // pred_check_branch
      %28 = sbr.rel (0) target = $region13
    $region12: #{tpu_custom_call.1} parent=1 // pred_region
      _
    $region13: #{tpu_custom_call.1} parent=1 // pred_fallthru
      _
    // Predicated region
    $region14: #{tpu_custom_call.1} parent=1 // pred_check
      _
    $region15: #{tpu_custom_call.1} parent=1 // pred_check_branch
      %30 = sbr.rel (0) target = $region17
    $region16: #{tpu_custom_call.1} parent=1 // pred_region
      _
    $region17: #{tpu_custom_call.1} parent=1 // pred_fallthru
      _
    // Predicated region
    $region18: #{tpu_custom_call.1} parent=1 // pred_check
      _
    $region19: #{tpu_custom_call.1} parent=1 // pred_check_branch
      %32 = sbr.rel (0) target = $region21
    $region20: #{tpu_custom_call.1} parent=1 // pred_region
      _
    $region21: #{tpu_custom_call.1} parent=1 // pred_fallthru
      _
    // Predicated region
    $region22: #{tpu_custom_call.1} parent=1 // pred_check
      _
    $region23: #{tpu_custom_call.1} parent=1 // pred_check_branch
      %34 = sbr.rel (0) target = $region25
    $region24: #{tpu_custom_call.1} parent=1 // pred_region
      _
    $region25: #{tpu_custom_call.1} parent=1 // pred_fallthru
      _
    // Predicated region
    $region26: #{tpu_custom_call.1} parent=1 // pred_check
      _
    $region27: #{tpu_custom_call.1} parent=1 // pred_check_branch
      %36 = sbr.rel (0) target = $region29
    $region28: #{tpu_custom_call.1} parent=1 // pred_region
      _
    $region29: #{tpu_custom_call.1} parent=1 // pred_fallthru
      _
    // Predicated region
    $region30: #{tpu_custom_call.1} parent=1 // pred_check
      _
    $region31: #{tpu_custom_call.1} parent=1 // pred_check_branch
      %38 = sbr.rel (0) target = $region33
    $region32: #{tpu_custom_call.1} parent=1 // pred_region
      _
    $region33: #{tpu_custom_call.1} parent=1 // pred_fallthru
      _
    // Predicated region
    $region34: #{tpu_custom_call.1} parent=1 // pred_check
      _
    $region35: #{tpu_custom_call.1} parent=1 // pred_check_branch
      %40 = sbr.rel (0) target = $region37
    $region36: #{tpu_custom_call.1} parent=1 // pred_region
      %41 = dma.done [#allocation5], 512
    $region37: #{tpu_custom_call.1} parent=1 // pred_fallthru
      _
    %v42 = vld [vmem:[%s1] sm:$0x3f]
    %v43 = vld [vmem:[#allocation4] sm:$0xff]
    %v44 = vld [vmem:[#allocation4 + $0x8] sm:$0xff]
    %v45 = vld [vmem:[#allocation4 + $0x10] sm:$0xff]
    %v49 = vcombine.high %v43, %v43
    %v50 = vcombine.high %v44, %v44
    %v51 = vcombine.high %v45, %v45
    %52 = vrot.lane.b32.xlu0 %v43, 19
    %v53 = vpop.permute.xlu0 %52
    %54 = vrot.lane.b32.xlu0 %v49, 19
    %v55 = vpop.permute.xlu0 %54
    %56 = vrot.lane.b32.xlu0 %v44, 19
    %v57 = vpop.permute.xlu0 %56
    %58 = vrot.lane.b32.xlu0 %v50, 19
    %v59 = vpop.permute.xlu0 %58
    %60 = vrot.lane.b32.xlu0 %v45, 19
    %v61 = vpop.permute.xlu0 %60
    %62 = vrot.lane.b32.xlu0 %v51, 19
    %v63 = vpop.permute.xlu0 %62
    %vm64 = vcmask 154624
    %v65 = vsel %vm64, %v53, %v55
    %v66 = vsel %vm64, %v55, %v57
    %v67 = vsel %vm64, %v57, %v59
    %v68 = vsel %vm64, %v59, %v61
    %v69 = vsel %vm64, %v61, %v63
    %76 = vst [vmem:[#allocation3] sm:$0xf] %v65
    %77 = vst [vmem:[#allocation3 + $0x8] sm:$0xf] %v66
    %78 = vst [vmem:[#allocation3 + $0x10] sm:$0xf] %v67
    %79 = vst [vmem:[#allocation3 + $0x18] sm:$0xf] %v68
    %80 = vst [vmem:[#allocation3 + $0x20] sm:$0xf] %v69
    %vm81 = vcmask 60416
    %82 = vst.msk [vmem:[#allocation3 + $0x28] sm:$0xf] %vm81, %v63
    %v83 = vld [vmem:[#allocation4] sm:$0xff]
    %v84 = vld [vmem:[#allocation4 + $0x8] sm:$0xff]
    %v85 = vld [vmem:[#allocation4 + $0x10] sm:$0xff]
    %v89 = vcombine.low %v83, %v83
    %v90 = vcombine.low %v84, %v84
    %v91 = vcombine.low %v85, %v85
    %92 = vrot.lane.b32.xlu0 %v89, 18
    %v93 = vpop.permute.xlu0 %92
    %94 = vrot.lane.b32.xlu0 %v83, 18
    %v95 = vpop.permute.xlu0 %94
    %96 = vrot.lane.b32.xlu0 %v90, 18
    %v97 = vpop.permute.xlu0 %96
    %98 = vrot.lane.b32.xlu0 %v84, 18
    %v99 = vpop.permute.xlu0 %98
    %100 = vrot.lane.b32.xlu0 %v91, 18
    %v101 = vpop.permute.xlu0 %100
    %102 = vrot.lane.b32.xlu0 %v85, 18
    %v103 = vpop.permute.xlu0 %102
    %vm104 = vcmask 146432
    %v105 = vsel %vm104, %v93, %v95
    %v106 = vsel %vm104, %v95, %v97
    %v107 = vsel %vm104, %v97, %v99
    %v108 = vsel %vm104, %v99, %v101
    %v109 = vsel %vm104, %v101, %v103
    %116 = vst [vmem:[#allocation3] sm:$0xf0] %v105
    %117 = vst [vmem:[#allocation3 + $0x8] sm:$0xf0] %v106
    %118 = vst [vmem:[#allocation3 + $0x10] sm:$0xf0] %v107
    %119 = vst [vmem:[#allocation3 + $0x18] sm:$0xf0] %v108
    %120 = vst [vmem:[#allocation3 + $0x20] sm:$0xf0] %v109
    %vm121 = vcmask 64516
    %122 = vst.msk [vmem:[#allocation3 + $0x28] sm:$0xf0] %vm121, %v103
    %v123 = vld [vmem:[#allocation4] sm:$0xff]
    %v124 = vld [vmem:[#allocation4 + $0x8] sm:$0xff]
    %v125 = vld [vmem:[#allocation4 + $0x10] sm:$0xff]
    %v129 = vcombine.high %v123, %v123
    %v130 = vcombine.high %v124, %v124
    %v131 = vcombine.high %v125, %v125
    %132 = vrot.lane.b32.xlu0 %v123, 17
    %v133 = vpop.permute.xlu0 %132
    %134 = vrot.lane.b32.xlu0 %v129, 17
    %v135 = vpop.permute.xlu0 %134
    %136 = vrot.lane.b32.xlu0 %v124, 17
    %v137 = vpop.permute.xlu0 %136
    %138 = vrot.lane.b32.xlu0 %v130, 17
    %v139 = vpop.permute.xlu0 %138
    %140 = vrot.lane.b32.xlu0 %v125, 17
    %v141 = vpop.permute.xlu0 %140
    %142 = vrot.lane.b32.xlu0 %v131, 17
    %v143 = vpop.permute.xlu0 %142
    %vm144 = vcmask 138240
    %v145 = vsel %vm144, %v133, %v135
    %v146 = vsel %vm144, %v135, %v137
    %v147 = vsel %vm144, %v137, %v139
    %v148 = vsel %vm144, %v139, %v141
    %v149 = vsel %vm144, %v141, %v143
    %156 = vst [vmem:[#allocation3 + $0x30] sm:$0xf] %v145
    %157 = vst [vmem:[#allocation3 + $0x38] sm:$0xf] %v146
    %158 = vst [vmem:[#allocation3 + $0x40] sm:$0xf] %v147
    %159 = vst [vmem:[#allocation3 + $0x48] sm:$0xf] %v148
    %160 = vst [vmem:[#allocation3 + $0x50] sm:$0xf] %v149
    %161 = vst.msk [vmem:[#allocation3 + $0x58] sm:$0xf] %vm81, %v143
    %v162 = vld [vmem:[#allocation4] sm:$0xff]
    %v163 = vld [vmem:[#allocation4 + $0x8] sm:$0xff]
    %v164 = vld [vmem:[#allocation4 + $0x10] sm:$0xff]
    %v165 = vld [vmem:[#allocation4 + $0x18] sm:$0xf]
    %v170 = vcombine.low %v162, %v162
    %v171 = vcombine.low %v163, %v163
    %v172 = vcombine.low %v164, %v164
    %v173 = vcombine.low %v165, %v165
    %174 = vrot.lane.b32.xlu0 %v170, 1
    %v175 = vpop.permute.xlu0 %174
    %176 = vrot.lane.b32.xlu0 %v162, 1
    %v177 = vpop.permute.xlu0 %176
    %178 = vrot.lane.b32.xlu0 %v171, 1
    %v179 = vpop.permute.xlu0 %178
    %180 = vrot.lane.b32.xlu0 %v163, 1
    %v181 = vpop.permute.xlu0 %180
    %182 = vrot.lane.b32.xlu0 %v172, 1
    %v183 = vpop.permute.xlu0 %182
    %184 = vrot.lane.b32.xlu0 %v164, 1
    %v185 = vpop.permute.xlu0 %184
    %186 = vrot.lane.b32.xlu0 %v173, 1
    %v187 = vpop.permute.xlu0 %186
    %vm188 = vcmask 7168
    %v189 = vsel %vm188, %v175, %v177
    %v190 = vsel %vm188, %v177, %v179
    %v191 = vsel %vm188, %v179, %v181
    %v192 = vsel %vm188, %v181, %v183
    %v193 = vsel %vm188, %v183, %v185
    %v194 = vsel %vm188, %v185, %v187
    %201 = vst [vmem:[#allocation3 + $0x30] sm:$0xf0] %v189
    %202 = vst [vmem:[#allocation3 + $0x38] sm:$0xf0] %v190
    %203 = vst [vmem:[#allocation3 + $0x40] sm:$0xf0] %v191
    %204 = vst [vmem:[#allocation3 + $0x48] sm:$0xf0] %v192
    %205 = vst [vmem:[#allocation3 + $0x50] sm:$0xf0] %v193
    %206 = vst.msk [vmem:[#allocation3 + $0x58] sm:$0xf0] %vm121, %v194
    %v207 = vld [vmem:[#allocation4 + $0x4] sm:$0xff]
    %v208 = vld [vmem:[#allocation4 + $0xc] sm:$0xff]
    %v209 = vld [vmem:[#allocation4 + $0x14] sm:$0xff]
    %v213 = vcombine.high %v207, %v207
    %v214 = vcombine.high %v208, %v208
    %v215 = vcombine.high %v209, %v209
    %219 = vst [vmem:[#allocation3 + $0x60] sm:$0xf] %v207
    %220 = vst [vmem:[#allocation3 + $0x68] sm:$0xf] %v213
    %221 = vst [vmem:[#allocation3 + $0x70] sm:$0xf] %v208
    %222 = vst [vmem:[#allocation3 + $0x78] sm:$0xf] %v214
    %223 = vst [vmem:[#allocation3 + $0x80] sm:$0xf] %v209
    %224 = vst.msk [vmem:[#allocation3 + $0x88] sm:$0xf] %vm81, %v215
    %v225 = vld [vmem:[#allocation4 + $0x4] sm:$0xff]
    %v226 = vld [vmem:[#allocation4 + $0xc] sm:$0xff]
    %v227 = vld [vmem:[#allocation4 + $0x14] sm:$0xff]
    %v231 = vcombine.low %v225, %v225
    %v232 = vcombine.low %v226, %v226
    %v233 = vcombine.low %v227, %v227
    %234 = vrot.lane.b32.xlu0 %v231, 127
    %v235 = vpop.permute.xlu0 %234
    %236 = vrot.lane.b32.xlu0 %v225, 127
    %v237 = vpop.permute.xlu0 %236
    %238 = vrot.lane.b32.xlu0 %v232, 127
    %v239 = vpop.permute.xlu0 %238
    %240 = vrot.lane.b32.xlu0 %v226, 127
    %v241 = vpop.permute.xlu0 %240
    %242 = vrot.lane.b32.xlu0 %v233, 127
    %v243 = vpop.permute.xlu0 %242
    %244 = vrot.lane.b32.xlu0 %v227, 127
    %v245 = vpop.permute.xlu0 %244
    %vm246 = vcmask 1039360
    %v247 = vsel %vm246, %v235, %v237
    %v248 = vsel %vm246, %v237, %v239
    %v249 = vsel %vm246, %v239, %v241
    %v250 = vsel %vm246, %v241, %v243
    %v251 = vsel %vm246, %v243, %v245
    %258 = vst [vmem:[#allocation3 + $0x60] sm:$0xf0] %v247
    %259 = vst [vmem:[#allocation3 + $0x68] sm:$0xf0] %v248
    %260 = vst [vmem:[#allocation3 + $0x70] sm:$0xf0] %v249
    %261 = vst [vmem:[#allocation3 + $0x78] sm:$0xf0] %v250
    %262 = vst [vmem:[#allocation3 + $0x80] sm:$0xf0] %v251
    %263 = vst.msk [vmem:[#allocation3 + $0x88] sm:$0xf0] %vm121, %v245
    %v264 = vld [vmem:[#allocation4 + $0x4] sm:$0xff]
    %v265 = vld [vmem:[#allocation4 + $0xc] sm:$0xff]
    %v266 = vld [vmem:[#allocation4 + $0x14] sm:$0xff]
    %v270 = vcombine.high %v264, %v264
    %v271 = vcombine.high %v265, %v265
    %v272 = vcombine.high %v266, %v266
    %273 = vrot.lane.b32.xlu0 %v264, 111
    %v274 = vpop.permute.xlu0 %273
    %275 = vrot.lane.b32.xlu0 %v270, 111
    %v276 = vpop.permute.xlu0 %275
    %277 = vrot.lane.b32.xlu0 %v265, 111
    %v278 = vpop.permute.xlu0 %277
    %279 = vrot.lane.b32.xlu0 %v271, 111
    %v280 = vpop.permute.xlu0 %279
    %281 = vrot.lane.b32.xlu0 %v266, 111
    %v282 = vpop.permute.xlu0 %281
    %283 = vrot.lane.b32.xlu0 %v272, 111
    %v284 = vpop.permute.xlu0 %283
    %vm285 = vcmask 908288
    %v286 = vsel %vm285, %v274, %v276
    %v287 = vsel %vm285, %v276, %v278
    %v288 = vsel %vm285, %v278, %v280
    %v289 = vsel %vm285, %v280, %v282
    %v290 = vsel %vm285, %v282, %v284
    %297 = vst [vmem:[#allocation3 + $0x90] sm:$0xf] %v286
    %298 = vst [vmem:[#allocation3 + $0x98] sm:$0xf] %v287
    %299 = vst [vmem:[#allocation3 + $0xa0] sm:$0xf] %v288
    %300 = vst [vmem:[#allocation3 + $0xa8] sm:$0xf] %v289
    %301 = vst [vmem:[#allocation3 + $0xb0] sm:$0xf] %v290
    %302 = vst.msk [vmem:[#allocation3 + $0xb8] sm:$0xf] %vm81, %v284
    %v303 = vld [vmem:[#allocation4 + $0x4] sm:$0xff]
    %v304 = vld [vmem:[#allocation4 + $0xc] sm:$0xff]
    %v305 = vld [vmem:[#allocation4 + $0x14] sm:$0xff]
    %v309 = vcombine.low %v303, %v303
    %v310 = vcombine.low %v304, %v304
    %v311 = vcombine.low %v305, %v305
    %312 = vrot.lane.b32.xlu0 %v309, 110
    %v313 = vpop.permute.xlu0 %312
    %314 = vrot.lane.b32.xlu0 %v303, 110
    %v315 = vpop.permute.xlu0 %314
    %316 = vrot.lane.b32.xlu0 %v310, 110
    %v317 = vpop.permute.xlu0 %316
    %318 = vrot.lane.b32.xlu0 %v304, 110
    %v319 = vpop.permute.xlu0 %318
    %320 = vrot.lane.b32.xlu0 %v311, 110
    %v321 = vpop.permute.xlu0 %320
    %322 = vrot.lane.b32.xlu0 %v305, 110
    %v323 = vpop.permute.xlu0 %322
    %vm324 = vcmask 900096
    %v325 = vsel %vm324, %v313, %v315
    %v326 = vsel %vm324, %v315, %v317
    %v327 = vsel %vm324, %v317, %v319
    %v328 = vsel %vm324, %v319, %v321
    %v329 = vsel %vm324, %v321, %v323
    %336 = vst [vmem:[#allocation3 + $0x90] sm:$0xf0] %v325
    %337 = vst [vmem:[#allocation3 + $0x98] sm:$0xf0] %v326
    %338 = vst [vmem:[#allocation3 + $0xa0] sm:$0xf0] %v327
    %339 = vst [vmem:[#allocation3 + $0xa8] sm:$0xf0] %v328
    %340 = vst [vmem:[#allocation3 + $0xb0] sm:$0xf0] %v329
    %341 = vst.msk [vmem:[#allocation3 + $0xb8] sm:$0xf0] %vm121, %v323
    %v342 = vld [vmem:[#allocation4 + $0x4] sm:$0xff]
    %v343 = vld [vmem:[#allocation4 + $0xc] sm:$0xff]
    %v344 = vld [vmem:[#allocation4 + $0x14] sm:$0xff]
    %v348 = vcombine.high %v342, %v342
    %v349 = vcombine.high %v343, %v343
    %v350 = vcombine.high %v344, %v344
    %351 = vrot.lane.b32.xlu0 %v342, 109
    %v352 = vpop.permute.xlu0 %351
    %353 = vrot.lane.b32.xlu0 %v348, 109
    %v354 = vpop.permute.xlu0 %353
    %355 = vrot.lane.b32.xlu0 %v343, 109
    %v356 = vpop.permute.xlu0 %355
    %357 = vrot.lane.b32.xlu0 %v349, 109
    %v358 = vpop.permute.xlu0 %357
    %359 = vrot.lane.b32.xlu0 %v344, 109
    %v360 = vpop.permute.xlu0 %359
    %361 = vrot.lane.b32.xlu0 %v350, 109
    %v362 = vpop.permute.xlu0 %361
    %vm363 = vcmask 891904
    %v364 = vsel %vm363, %v352, %v354
    %v365 = vsel %vm363, %v354, %v356
    %v366 = vsel %vm363, %v356, %v358
    %v367 = vsel %vm363, %v358, %v360
    %v368 = vsel %vm363, %v360, %v362
    %375 = vst [vmem:[#allocation3 + $0xc0] sm:$0xf] %v364
    %376 = vst [vmem:[#allocation3 + $0xc8] sm:$0xf] %v365
    %377 = vst [vmem:[#allocation3 + $0xd0] sm:$0xf] %v366
    %378 = vst [vmem:[#allocation3 + $0xd8] sm:$0xf] %v367
    %379 = vst [vmem:[#allocation3 + $0xe0] sm:$0xf] %v368
    %380 = vst.msk [vmem:[#allocation3 + $0xe8] sm:$0xf] %vm81, %v362
    %v381 = vld [vmem:[%s2] sm:$0xf]
    %v382 = vld [vmem:[#allocation3] sm:$0xff]
    %v383 = vld [vmem:[#allocation3 + $0x8] sm:$0xff]
    %v384 = vld [vmem:[#allocation3 + $0x10] sm:$0xff]
    %v385 = vld [vmem:[#allocation3 + $0x18] sm:$0xff]
    %v386 = vld [vmem:[#allocation3 + $0x20] sm:$0xff]
    %v387 = vld [vmem:[#allocation3 + $0x28] sm:$0xff]
    %v388 = vld [vmem:[#allocation3 + $0x30] sm:$0xff]
    %v389 = vld [vmem:[#allocation3 + $0x38] sm:$0xff]
    %v390 = vld [vmem:[#allocation3 + $0x40] sm:$0xff]
    %v391 = vld [vmem:[#allocation3 + $0x48] sm:$0xff]
    %v392 = vld [vmem:[#allocation3 + $0x50] sm:$0xff]
    %v393 = vld [vmem:[#allocation3 + $0x58] sm:$0xff]
    %v394 = vld [vmem:[#allocation3 + $0x60] sm:$0xff]
    %v395 = vld [vmem:[#allocation3 + $0x68] sm:$0xff]
    %v396 = vld [vmem:[#allocation3 + $0x70] sm:$0xff]
    %v397 = vld [vmem:[#allocation3 + $0x78] sm:$0xff]
    %v398 = vld [vmem:[#allocation3 + $0x80] sm:$0xff]
    %v399 = vld [vmem:[#allocation3 + $0x88] sm:$0xff]
    %v400 = vld [vmem:[#allocation3 + $0x90] sm:$0xff]
    %v401 = vld [vmem:[#allocation3 + $0x98] sm:$0xff]
    %v402 = vld [vmem:[#allocation3 + $0xa0] sm:$0xff]
    %v403 = vld [vmem:[#allocation3 + $0xa8] sm:$0xff]
    %v404 = vld [vmem:[#allocation3 + $0xb0] sm:$0xff]
    %v405 = vld [vmem:[#allocation3 + $0xb8] sm:$0xff]
    %v406 = vld [vmem:[#allocation3 + $0xc0] sm:$0xf]
    %v407 = vld [vmem:[#allocation3 + $0xc8] sm:$0xf]
    %v408 = vld [vmem:[#allocation3 + $0xd0] sm:$0xf]
    %v409 = vld [vmem:[#allocation3 + $0xd8] sm:$0xf]
    %v410 = vld [vmem:[#allocation3 + $0xe0] sm:$0xf]
    %v411 = vld [vmem:[#allocation3 + $0xe8] sm:$0xf]
    %vm412 = vcmask 293888
    %v414 = vsel %vm412, %v381, 0
    %vm416 = vcmask 1043456
    %v418 = vsel %vm416, %v406, 0
    %v421 = vsel %vm416, %v407, 0
    %v424 = vsel %vm416, %v408, 0
    %v427 = vsel %vm416, %v409, 0
    %v430 = vsel %vm416, %v410, 0
    %v433 = vsel %vm416, %v411, 0
    %435 = vmatprep.subr.mxu0 %v383
    %436 = vmatpush1.msra.mxu0 %v382
    %437 = vmatprep.subr.mxu0 %v389
    %438 = vmatpush1.msra.mxu0 %v388
    %439 = vmatprep.subr.mxu0 %v395
    %440 = vmatpush1.msra.mxu0 %v394
    %441 = vmatprep.subr.mxu0 %v401
    %442 = vmatpush1.msra.mxu0 %v400
    %443 = vmatprep.subr.mxu0 %v421
    %444 = vmatpush1.msra.mxu0 %v418
    %445 = vmatprep.subr.mxu0 0.0
    %446 = vmatpush1.msra.mxu0 0.0
    %447 = vmatprep.subr.mxu0 0.0
    %448 = vmatpush1.msra.mxu0 0.0
    %449 = vmatprep.subr.mxu0 0.0
    %450 = vmatpush1.msra.mxu0 0.0
    %451 = vmatprep.subr.mxu0 0.0
    %452 = vmatpush1.msra.mxu0 0.0
    %453 = vmatprep.subr.mxu0 0.0
    %454 = vmatpush1.msra.mxu0 0.0
    %455 = vmatprep.subr.mxu0 0.0
    %456 = vmatpush1.msra.mxu0 0.0
    %457 = vmatprep.subr.mxu0 0.0
    %458 = vmatpush1.msra.mxu0 0.0
    %459 = vmatprep.subr.mxu0 0.0
    %460 = vmatpush1.msra.mxu0 0.0
    %461 = vmatprep.subr.mxu0 0.0
    %462 = vmatpush1.msra.mxu0 0.0
    %463 = vmatprep.subr.mxu0 0.0
    %464 = vmatpush1.msra.mxu0 0.0
    %465 = vmatprep.subr.mxu0 0.0
    %466 = vmatpush1.msra.mxu0 0.0
    %467 = vmatprep.subr.mxu0 0.0
    %468 = vmatpush1.msra.mxu0 0.0
    %469 = vmatprep.subr.mxu0 0.0
    %470 = vmatpush1.msra.mxu0 0.0
    %471 = vmatprep.subr.mxu0 0.0
    %472 = vmatpush1.msra.mxu0 0.0
    %473 = vmatprep.subr.mxu0 0.0
    %474 = vmatpush1.msra.mxu0 0.0
    %475 = vmatprep.subr.mxu0 0.0
    %476 = vmatpush1.msra.mxu0 0.0
    %477 = vmatprep.subr.mxu0 0.0
    %478 = vmatpush1.msra.mxu0 0.0
    %479 = vmatprep.subr.mxu0 0.0
    %480 = vmatpush1.msra.mxu0 0.0
    %481 = vmatprep.subr.mxu0 0.0
    %482 = vmatpush1.msra.mxu0 0.0
    %483 = vmatprep.subr.mxu0 0.0
    %484 = vmatpush1.msra.mxu0 0.0
    %485 = vmatprep.subr.mxu0 0.0
    %486 = vmatpush1.msra.mxu0 0.0
    %487 = vmatprep.subr.mxu0 0.0
    %488 = vmatpush1.msra.mxu0 0.0
    %489 = vmatprep.subr.mxu0 0.0
    %490 = vmatpush1.msra.mxu0 0.0
    %491 = vmatprep.subr.mxu0 0.0
    %492 = vmatpush1.msra.mxu0 0.0
    %493 = vmatprep.subr.mxu0 0.0
    %494 = vmatpush1.msra.mxu0 0.0
    %495 = vmatprep.subr.mxu0 0.0
    %496 = vmatpush1.msra.mxu0 0.0
    %497 = vmatprep.subr.mxu0 0.0
    %498 = vmatpush1.msra.mxu0 0.0
    %499 = vmatprep.mubr.f32.mxu0 0.0
    %500 = vmatmul.mubr.f32.gmra.mrb[0].mxu0 %v414
    %v501 = vpop.f32.mrb[0].mxu0
    %v502 = vadd.f32 0.0, %v501
    %v503 = vpop.f32.mrb[0].mxu0
    %v504 = vadd.f32 0.0, %v503
    %505 = vdwg.mxu0
    %506 = vmatprep.subr.mxu0 %v385
    %507 = vmatpush1.msra.mxu0 %v384
    %508 = vmatprep.subr.mxu0 %v391
    %509 = vmatpush1.msra.mxu0 %v390
    %510 = vmatprep.subr.mxu0 %v397
    %511 = vmatpush1.msra.mxu0 %v396
    %512 = vmatprep.subr.mxu0 %v403
    %513 = vmatpush1.msra.mxu0 %v402
    %514 = vmatprep.subr.mxu0 %v427
    %515 = vmatpush1.msra.mxu0 %v424
    %516 = vmatprep.subr.mxu0 0.0
    %517 = vmatpush1.msra.mxu0 0.0
    %518 = vmatprep.subr.mxu0 0.0
    %519 = vmatpush1.msra.mxu0 0.0
    %520 = vmatprep.subr.mxu0 0.0
    %521 = vmatpush1.msra.mxu0 0.0
    %522 = vmatprep.subr.mxu0 0.0
    %523 = vmatpush1.msra.mxu0 0.0
    %524 = vmatprep.subr.mxu0 0.0
    %525 = vmatpush1.msra.mxu0 0.0
    %526 = vmatprep.subr.mxu0 0.0
    %527 = vmatpush1.msra.mxu0 0.0
    %528 = vmatprep.subr.mxu0 0.0
    %529 = vmatpush1.msra.mxu0 0.0
    %530 = vmatprep.subr.mxu0 0.0
    %531 = vmatpush1.msra.mxu0 0.0
    %532 = vmatprep.subr.mxu0 0.0
    %533 = vmatpush1.msra.mxu0 0.0
    %534 = vmatprep.subr.mxu0 0.0
    %535 = vmatpush1.msra.mxu0 0.0
    %536 = vmatprep.subr.mxu0 0.0
    %537 = vmatpush1.msra.mxu0 0.0
    %538 = vmatprep.subr.mxu0 0.0
    %539 = vmatpush1.msra.mxu0 0.0
    %540 = vmatprep.subr.mxu0 0.0
    %541 = vmatpush1.msra.mxu0 0.0
    %542 = vmatprep.subr.mxu0 0.0
    %543 = vmatpush1.msra.mxu0 0.0
    %544 = vmatprep.subr.mxu0 0.0
    %545 = vmatpush1.msra.mxu0 0.0
    %546 = vmatprep.subr.mxu0 0.0
    %547 = vmatpush1.msra.mxu0 0.0
    %548 = vmatprep.subr.mxu0 0.0
    %549 = vmatpush1.msra.mxu0 0.0
    %550 = vmatprep.subr.mxu0 0.0
    %551 = vmatpush1.msra.mxu0 0.0
    %552 = vmatprep.subr.mxu0 0.0
    %553 = vmatpush1.msra.mxu0 0.0
    %554 = vmatprep.subr.mxu0 0.0
    %555 = vmatpush1.msra.mxu0 0.0
    %556 = vmatprep.subr.mxu0 0.0
    %557 = vmatpush1.msra.mxu0 0.0
    %558 = vmatprep.subr.mxu0 0.0
    %559 = vmatpush1.msra.mxu0 0.0
    %560 = vmatprep.subr.mxu0 0.0
    %561 = vmatpush1.msra.mxu0 0.0
    %562 = vmatprep.subr.mxu0 0.0
    %563 = vmatpush1.msra.mxu0 0.0
    %564 = vmatprep.subr.mxu0 0.0
    %565 = vmatpush1.msra.mxu0 0.0
    %566 = vmatprep.subr.mxu0 0.0
    %567 = vmatpush1.msra.mxu0 0.0
    %568 = vmatprep.subr.mxu0 0.0
    %569 = vmatpush1.msra.mxu0 0.0
    %570 = vmatprep.mubr.f32.mxu0 0.0
    %571 = vmatmul.mubr.f32.gmra.mrb[0].mxu0 %v414
    %v572 = vpop.f32.mrb[0].mxu0
    %v573 = vadd.f32 0.0, %v572
    %v574 = vpop.f32.mrb[0].mxu0
    %v575 = vadd.f32 0.0, %v574
    %576 = vdwg.mxu0
    %577 = vmatprep.subr.mxu0 %v387
    %578 = vmatpush1.msra.mxu0 %v386
    %579 = vmatprep.subr.mxu0 %v393
    %580 = vmatpush1.msra.mxu0 %v392
    %581 = vmatprep.subr.mxu0 %v399
    %582 = vmatpush1.msra.mxu0 %v398
    %583 = vmatprep.subr.mxu0 %v405
    %584 = vmatpush1.msra.mxu0 %v404
    %585 = vmatprep.subr.mxu0 %v433
    %586 = vmatpush1.msra.mxu0 %v430
    %587 = vmatprep.subr.mxu0 0.0
    %588 = vmatpush1.msra.mxu0 0.0
    %589 = vmatprep.subr.mxu0 0.0
    %590 = vmatpush1.msra.mxu0 0.0
    %591 = vmatprep.subr.mxu0 0.0
    %592 = vmatpush1.msra.mxu0 0.0
    %593 = vmatprep.subr.mxu0 0.0
    %594 = vmatpush1.msra.mxu0 0.0
    %595 = vmatprep.subr.mxu0 0.0
    %596 = vmatpush1.msra.mxu0 0.0
    %597 = vmatprep.subr.mxu0 0.0
    %598 = vmatpush1.msra.mxu0 0.0
    %599 = vmatprep.subr.mxu0 0.0
    %600 = vmatpush1.msra.mxu0 0.0
    %601 = vmatprep.subr.mxu0 0.0
    %602 = vmatpush1.msra.mxu0 0.0
    %603 = vmatprep.subr.mxu0 0.0
    %604 = vmatpush1.msra.mxu0 0.0
    %605 = vmatprep.subr.mxu0 0.0
    %606 = vmatpush1.msra.mxu0 0.0
    %607 = vmatprep.subr.mxu0 0.0
    %608 = vmatpush1.msra.mxu0 0.0
    %609 = vmatprep.subr.mxu0 0.0
    %610 = vmatpush1.msra.mxu0 0.0
    %611 = vmatprep.subr.mxu0 0.0
    %612 = vmatpush1.msra.mxu0 0.0
    %613 = vmatprep.subr.mxu0 0.0
    %614 = vmatpush1.msra.mxu0 0.0
    %615 = vmatprep.subr.mxu0 0.0
    %616 = vmatpush1.msra.mxu0 0.0
    %617 = vmatprep.subr.mxu0 0.0
    %618 = vmatpush1.msra.mxu0 0.0
    %619 = vmatprep.subr.mxu0 0.0
    %620 = vmatpush1.msra.mxu0 0.0
    %621 = vmatprep.subr.mxu0 0.0
    %622 = vmatpush1.msra.mxu0 0.0
    %623 = vmatprep.subr.mxu0 0.0
    %624 = vmatpush1.msra.mxu0 0.0
    %625 = vmatprep.subr.mxu0 0.0
    %626 = vmatpush1.msra.mxu0 0.0
    %627 = vmatprep.subr.mxu0 0.0
    %628 = vmatpush1.msra.mxu0 0.0
    %629 = vmatprep.subr.mxu0 0.0
    %630 = vmatpush1.msra.mxu0 0.0
    %631 = vmatprep.subr.mxu0 0.0
    %632 = vmatpush1.msra.mxu0 0.0
    %633 = vmatprep.subr.mxu0 0.0
    %634 = vmatpush1.msra.mxu0 0.0
    %635 = vmatprep.subr.mxu0 0.0
    %636 = vmatpush1.msra.mxu0 0.0
    %637 = vmatprep.subr.mxu0 0.0
    %638 = vmatpush1.msra.mxu0 0.0
    %639 = vmatprep.subr.mxu0 0.0
    %640 = vmatpush1.msra.mxu0 0.0
    %641 = vmatprep.mubr.f32.mxu0 0.0
    %642 = vmatmul.mubr.f32.gmra.mrb[0].mxu0 %v414
    %v643 = vpop.f32.mrb[0].mxu0
    %v644 = vadd.f32 0.0, %v643
    %v645 = vpop.f32.mrb[0].mxu0
    %v646 = vadd.f32 0.0, %v645
    %647 = vdwg.mxu0
    %v649 = vlaneseq
    %v650 = vshrl.u32 %v649, 7
    %v651 = vsub.s32 0, %v650
    %v652 = vrot.slane %v42, %v651
    %v653 = vlaneseq
    %v654 = vshrl.u32 %v653, 7
    %v655 = vsub.s32 1, %v654
    %v656 = vrot.slane %v42, %v655
    %v657 = vlaneseq
    %v658 = vshrl.u32 %v657, 7
    %v659 = vsub.s32 2, %v658
    %v660 = vrot.slane %v42, %v659
    %v661 = vlaneseq
    %v662 = vshrl.u32 %v661, 7
    %v663 = vsub.s32 3, %v662
    %v664 = vrot.slane %v42, %v663
    %v665 = vlaneseq
    %v666 = vshrl.u32 %v665, 7
    %v667 = vsub.s32 4, %v666
    %v668 = vrot.slane %v42, %v667
    %v669 = vlaneseq
    %v670 = vshrl.u32 %v669, 7
    %v671 = vsub.s32 5, %v670
    %v672 = vrot.slane %v42, %v671
    %v679 = vmul.f32 %v502, %v652
    %v680 = vmul.f32 %v504, %v656
    %v681 = vmul.f32 %v573, %v660
    %v682 = vmul.f32 %v575, %v664
    %v683 = vmul.f32 %v644, %v668
    %v684 = vmul.f32 %v646, %v672
    %v685 = vsel %vm416, %v679, 0.0
    %v686 = vsel %vm416, %v680, 0.0
    %v687 = vadd.f32 %v685, %v686
    %v688 = vsel %vm416, %v681, 0.0
    %v689 = vadd.f32 %v687, %v688
    %v690 = vsel %vm416, %v682, 0.0
    %v691 = vadd.f32 %v689, %v690
    %v692 = vsel %vm416, %v683, 0.0
    %v693 = vadd.f32 %v691, %v692
    %v694 = vsel %vm81, %v684, 0.0
    %v695 = vadd.f32 %v693, %v694
    %696 = vadd.xlane.f32.xlu0 %v695
    %v697 = vpop.xlane.xlu0 %696
    %v698 = vmul.f32 %v679, %v502
    %v699 = vmul.f32 %v680, %v504
    %v700 = vmul.f32 %v681, %v573
    %v701 = vmul.f32 %v682, %v575
    %v702 = vmul.f32 %v683, %v644
    %v703 = vmul.f32 %v684, %v646
    %v704 = vsel %vm416, %v698, 0.0
    %v705 = vsel %vm416, %v699, 0.0
    %v706 = vadd.f32 %v704, %v705
    %v707 = vsel %vm416, %v700, 0.0
    %v708 = vadd.f32 %v706, %v707
    %v709 = vsel %vm416, %v701, 0.0
    %v710 = vadd.f32 %v708, %v709
    %v711 = vsel %vm416, %v702, 0.0
    %v712 = vadd.f32 %v710, %v711
    %v713 = vsel %vm81, %v703, 0.0
    %v714 = vadd.f32 %v712, %v713
    %715 = vadd.xlane.f32.xlu0 %v714
    %v716 = vpop.xlane.xlu0 %715
    %v717 = vmul.f32 %v697, 0.001953125
    %v718 = vmul.f32 %v716, 0.001953125
    %v719 = vmul.f32 %v717, %v717
    %v720 = vsub.f32 %v718, %v719
    %v721 = vmax.f32 %v720, 0.0
    %v722 = vadd.f32 %v721, 1e-05
    %v723 = vrsqrt.pop %v722
    %v724 = vld [vmem:[%s3] sm:$0xf]
    %v725 = vmul.f32 %v723, %v724
    %v726 = vsub.f32 %v502, %v717
    %v727 = vsub.f32 %v504, %v717
    %v728 = vsub.f32 %v573, %v717
    %v729 = vsub.f32 %v575, %v717
    %v730 = vsub.f32 %v644, %v717
    %v731 = vsub.f32 %v646, %v717
    %733 = vset.pattern.permute.xlu0 0
    %734 = vperm.xlu0 %733, %v725
    %v735 = vpop.permute.xlu0 %734
    %v737 = vmul.f32 %v726, %v735
    %v738 = vmul.f32 %v727, %v735
    %v739 = vmul.f32 %v728, %v735
    %v740 = vmul.f32 %v729, %v735
    %v741 = vmul.f32 %v730, %v735
    %v742 = vmul.f32 %v731, %v735
    %v743 = vld [vmem:[%s4] sm:$0xf]
    %745 = vset.pattern.permute.xlu0 0
    %746 = vperm.xlu0 %745, %v743
    %v747 = vpop.permute.xlu0 %746
    %v749 = vadd.f32 %v737, %v747
    %v750 = vadd.f32 %v738, %v747
    %v751 = vadd.f32 %v739, %v747
    %v752 = vadd.f32 %v740, %v747
    %v753 = vadd.f32 %v741, %v747
    %v754 = vadd.f32 %v742, %v747
    %v755 = vmax.f32 %v749, 0.0
    %v756 = vmax.f32 %v750, 0.0
    %v757 = vmax.f32 %v751, 0.0
    %v758 = vmax.f32 %v752, 0.0
    %v759 = vmax.f32 %v753, 0.0
    %v760 = vmax.f32 %v754, 0.0
    %v761 = vmul.f32 %v755, %v652
    %v762 = vmul.f32 %v756, %v656
    %v763 = vmul.f32 %v757, %v660
    %v764 = vmul.f32 %v758, %v664
    %v765 = vmul.f32 %v759, %v668
    %v766 = vmul.f32 %v760, %v672
    %767 = vst [vmem:[#allocation2] sm:$0xf] 0.0
    %vm768 = vcmask 1043520
    %vm769 = vmor %vm121, %vm768
    %770 = vst.msk [vmem:[#allocation2 + $0x18] sm:$0xff] %vm769, 0.0
    %v777 = vcombine.low %v761, %v762
    %v778 = vcombine.low %v763, %v764
    %v779 = vcombine.low %v765, %v766
    %783 = vst [vmem:[#allocation2 + $0x4] sm:$0xff] %v777
    %784 = vst [vmem:[#allocation2 + $0xc] sm:$0xff] %v778
    %vm785 = vmor %vm121, %vm416
    %786 = vst.msk [vmem:[#allocation2 + $0x14] sm:$0xff] %vm785, %v779
    %v787 = vld [vmem:[#allocation2] sm:$0xff]
    %v788 = vld [vmem:[#allocation2 + $0x8] sm:$0xff]
    %v789 = vld [vmem:[#allocation2 + $0x10] sm:$0xff]
    %v793 = vcombine.high %v787, %v787
    %v794 = vcombine.high %v788, %v788
    %v795 = vcombine.high %v789, %v789
    %796 = vrot.lane.b32.xlu0 %v787, 19
    %v797 = vpop.permute.xlu0 %796
    %798 = vrot.lane.b32.xlu0 %v793, 19
    %v799 = vpop.permute.xlu0 %798
    %800 = vrot.lane.b32.xlu0 %v788, 19
    %v801 = vpop.permute.xlu0 %800
    %802 = vrot.lane.b32.xlu0 %v794, 19
    %v803 = vpop.permute.xlu0 %802
    %804 = vrot.lane.b32.xlu0 %v789, 19
    %v805 = vpop.permute.xlu0 %804
    %806 = vrot.lane.b32.xlu0 %v795, 19
    %v807 = vpop.permute.xlu0 %806
    %v808 = vsel %vm64, %v797, %v799
    %v809 = vsel %vm64, %v799, %v801
    %v810 = vsel %vm64, %v801, %v803
    %v811 = vsel %vm64, %v803, %v805
    %v812 = vsel %vm64, %v805, %v807
    %819 = vst [vmem:[#allocation3] sm:$0xf] %v808
    %820 = vst [vmem:[#allocation3 + $0x8] sm:$0xf] %v809
    %821 = vst [vmem:[#allocation3 + $0x10] sm:$0xf] %v810
    %822 = vst [vmem:[#allocation3 + $0x18] sm:$0xf] %v811
    %823 = vst [vmem:[#allocation3 + $0x20] sm:$0xf] %v812
    %824 = vst.msk [vmem:[#allocation3 + $0x28] sm:$0xf] %vm81, %v807
    %v825 = vld [vmem:[#allocation2] sm:$0xff]
    %v826 = vld [vmem:[#allocation2 + $0x8] sm:$0xff]
    %v827 = vld [vmem:[#allocation2 + $0x10] sm:$0xff]
    %v831 = vcombine.low %v825, %v825
    %v832 = vcombine.low %v826, %v826
    %v833 = vcombine.low %v827, %v827
    %834 = vrot.lane.b32.xlu0 %v831, 18
    %v835 = vpop.permute.xlu0 %834
    %836 = vrot.lane.b32.xlu0 %v825, 18
    %v837 = vpop.permute.xlu0 %836
    %838 = vrot.lane.b32.xlu0 %v832, 18
    %v839 = vpop.permute.xlu0 %838
    %840 = vrot.lane.b32.xlu0 %v826, 18
    %v841 = vpop.permute.xlu0 %840
    %842 = vrot.lane.b32.xlu0 %v833, 18
    %v843 = vpop.permute.xlu0 %842
    %844 = vrot.lane.b32.xlu0 %v827, 18
    %v845 = vpop.permute.xlu0 %844
    %v846 = vsel %vm104, %v835, %v837
    %v847 = vsel %vm104, %v837, %v839
    %v848 = vsel %vm104, %v839, %v841
    %v849 = vsel %vm104, %v841, %v843
    %v850 = vsel %vm104, %v843, %v845
    %857 = vst [vmem:[#allocation3] sm:$0xf0] %v846
    %858 = vst [vmem:[#allocation3 + $0x8] sm:$0xf0] %v847
    %859 = vst [vmem:[#allocation3 + $0x10] sm:$0xf0] %v848
    %860 = vst [vmem:[#allocation3 + $0x18] sm:$0xf0] %v849
    %861 = vst [vmem:[#allocation3 + $0x20] sm:$0xf0] %v850
    %862 = vst.msk [vmem:[#allocation3 + $0x28] sm:$0xf0] %vm121, %v845
    %v863 = vld [vmem:[#allocation2] sm:$0xff]
    %v864 = vld [vmem:[#allocation2 + $0x8] sm:$0xff]
    %v865 = vld [vmem:[#allocation2 + $0x10] sm:$0xff]
    %v869 = vcombine.high %v863, %v863
    %v870 = vcombine.high %v864, %v864
    %v871 = vcombine.high %v865, %v865
    %872 = vrot.lane.b32.xlu0 %v863, 17
    %v873 = vpop.permute.xlu0 %872
    %874 = vrot.lane.b32.xlu0 %v869, 17
    %v875 = vpop.permute.xlu0 %874
    %876 = vrot.lane.b32.xlu0 %v864, 17
    %v877 = vpop.permute.xlu0 %876
    %878 = vrot.lane.b32.xlu0 %v870, 17
    %v879 = vpop.permute.xlu0 %878
    %880 = vrot.lane.b32.xlu0 %v865, 17
    %v881 = vpop.permute.xlu0 %880
    %882 = vrot.lane.b32.xlu0 %v871, 17
    %v883 = vpop.permute.xlu0 %882
    %v884 = vsel %vm144, %v873, %v875
    %v885 = vsel %vm144, %v875, %v877
    %v886 = vsel %vm144, %v877, %v879
    %v887 = vsel %vm144, %v879, %v881
    %v888 = vsel %vm144, %v881, %v883
    %895 = vst [vmem:[#allocation3 + $0x30] sm:$0xf] %v884
    %896 = vst [vmem:[#allocation3 + $0x38] sm:$0xf] %v885
    %897 = vst [vmem:[#allocation3 + $0x40] sm:$0xf] %v886
    %898 = vst [vmem:[#allocation3 + $0x48] sm:$0xf] %v887
    %899 = vst [vmem:[#allocation3 + $0x50] sm:$0xf] %v888
    %900 = vst.msk [vmem:[#allocation3 + $0x58] sm:$0xf] %vm81, %v883
    %v901 = vld [vmem:[#allocation2] sm:$0xff]
    %v902 = vld [vmem:[#allocation2 + $0x8] sm:$0xff]
    %v903 = vld [vmem:[#allocation2 + $0x10] sm:$0xff]
    %v904 = vld [vmem:[#allocation2 + $0x18] sm:$0xf]
    %v909 = vcombine.low %v901, %v901
    %v910 = vcombine.low %v902, %v902
    %v911 = vcombine.low %v903, %v903
    %v912 = vcombine.low %v904, %v904
    %913 = vrot.lane.b32.xlu0 %v909, 1
    %v914 = vpop.permute.xlu0 %913
    %915 = vrot.lane.b32.xlu0 %v901, 1
    %v916 = vpop.permute.xlu0 %915
    %917 = vrot.lane.b32.xlu0 %v910, 1
    %v918 = vpop.permute.xlu0 %917
    %919 = vrot.lane.b32.xlu0 %v902, 1
    %v920 = vpop.permute.xlu0 %919
    %921 = vrot.lane.b32.xlu0 %v911, 1
    %v922 = vpop.permute.xlu0 %921
    %923 = vrot.lane.b32.xlu0 %v903, 1
    %v924 = vpop.permute.xlu0 %923
    %925 = vrot.lane.b32.xlu0 %v912, 1
    %v926 = vpop.permute.xlu0 %925
    %v927 = vsel %vm188, %v914, %v916
    %v928 = vsel %vm188, %v916, %v918
    %v929 = vsel %vm188, %v918, %v920
    %v930 = vsel %vm188, %v920, %v922
    %v931 = vsel %vm188, %v922, %v924
    %v932 = vsel %vm188, %v924, %v926
    %939 = vst [vmem:[#allocation3 + $0x30] sm:$0xf0] %v927
    %940 = vst [vmem:[#allocation3 + $0x38] sm:$0xf0] %v928
    %941 = vst [vmem:[#allocation3 + $0x40] sm:$0xf0] %v929
    %942 = vst [vmem:[#allocation3 + $0x48] sm:$0xf0] %v930
    %943 = vst [vmem:[#allocation3 + $0x50] sm:$0xf0] %v931
    %944 = vst.msk [vmem:[#allocation3 + $0x58] sm:$0xf0] %vm121, %v932
    %v945 = vld [vmem:[#allocation2 + $0x4] sm:$0xff]
    %v946 = vld [vmem:[#allocation2 + $0xc] sm:$0xff]
    %v947 = vld [vmem:[#allocation2 + $0x14] sm:$0xff]
    %v951 = vcombine.high %v945, %v945
    %v952 = vcombine.high %v946, %v946
    %v953 = vcombine.high %v947, %v947
    %957 = vst [vmem:[#allocation3 + $0x60] sm:$0xf] %v945
    %958 = vst [vmem:[#allocation3 + $0x68] sm:$0xf] %v951
    %959 = vst [vmem:[#allocation3 + $0x70] sm:$0xf] %v946
    %960 = vst [vmem:[#allocation3 + $0x78] sm:$0xf] %v952
    %961 = vst [vmem:[#allocation3 + $0x80] sm:$0xf] %v947
    %962 = vst.msk [vmem:[#allocation3 + $0x88] sm:$0xf] %vm81, %v953
    %v963 = vld [vmem:[#allocation2 + $0x4] sm:$0xff]
    %v964 = vld [vmem:[#allocation2 + $0xc] sm:$0xff]
    %v965 = vld [vmem:[#allocation2 + $0x14] sm:$0xff]
    %v969 = vcombine.low %v963, %v963
    %v970 = vcombine.low %v964, %v964
    %v971 = vcombine.low %v965, %v965
    %972 = vrot.lane.b32.xlu0 %v969, 127
    %v973 = vpop.permute.xlu0 %972
    %974 = vrot.lane.b32.xlu0 %v963, 127
    %v975 = vpop.permute.xlu0 %974
    %976 = vrot.lane.b32.xlu0 %v970, 127
    %v977 = vpop.permute.xlu0 %976
    %978 = vrot.lane.b32.xlu0 %v964, 127
    %v979 = vpop.permute.xlu0 %978
    %980 = vrot.lane.b32.xlu0 %v971, 127
    %v981 = vpop.permute.xlu0 %980
    %982 = vrot.lane.b32.xlu0 %v965, 127
    %v983 = vpop.permute.xlu0 %982
    %v984 = vsel %vm246, %v973, %v975
    %v985 = vsel %vm246, %v975, %v977
    %v986 = vsel %vm246, %v977, %v979
    %v987 = vsel %vm246, %v979, %v981
    %v988 = vsel %vm246, %v981, %v983
    %995 = vst [vmem:[#allocation3 + $0x60] sm:$0xf0] %v984
    %996 = vst [vmem:[#allocation3 + $0x68] sm:$0xf0] %v985
    %997 = vst [vmem:[#allocation3 + $0x70] sm:$0xf0] %v986
    %998 = vst [vmem:[#allocation3 + $0x78] sm:$0xf0] %v987
    %999 = vst [vmem:[#allocation3 + $0x80] sm:$0xf0] %v988
    %1000 = vst.msk [vmem:[#allocation3 + $0x88] sm:$0xf0] %vm121, %v983
    %v1001 = vld [vmem:[#allocation2 + $0x4] sm:$0xff]
    %v1002 = vld [vmem:[#allocation2 + $0xc] sm:$0xff]
    %v1003 = vld [vmem:[#allocation2 + $0x14] sm:$0xff]
    %v1007 = vcombine.high %v1001, %v1001
    %v1008 = vcombine.high %v1002, %v1002
    %v1009 = vcombine.high %v1003, %v1003
    %1010 = vrot.lane.b32.xlu0 %v1001, 111
    %v1011 = vpop.permute.xlu0 %1010
    %1012 = vrot.lane.b32.xlu0 %v1007, 111
    %v1013 = vpop.permute.xlu0 %1012
    %1014 = vrot.lane.b32.xlu0 %v1002, 111
    %v1015 = vpop.permute.xlu0 %1014
    %1016 = vrot.lane.b32.xlu0 %v1008, 111
    %v1017 = vpop.permute.xlu0 %1016
    %1018 = vrot.lane.b32.xlu0 %v1003, 111
    %v1019 = vpop.permute.xlu0 %1018
    %1020 = vrot.lane.b32.xlu0 %v1009, 111
    %v1021 = vpop.permute.xlu0 %1020
    %v1022 = vsel %vm285, %v1011, %v1013
    %v1023 = vsel %vm285, %v1013, %v1015
    %v1024 = vsel %vm285, %v1015, %v1017
    %v1025 = vsel %vm285, %v1017, %v1019
    %v1026 = vsel %vm285, %v1019, %v1021
    %1033 = vst [vmem:[#allocation3 + $0x90] sm:$0xf] %v1022
    %1034 = vst [vmem:[#allocation3 + $0x98] sm:$0xf] %v1023
    %1035 = vst [vmem:[#allocation3 + $0xa0] sm:$0xf] %v1024
    %1036 = vst [vmem:[#allocation3 + $0xa8] sm:$0xf] %v1025
    %1037 = vst [vmem:[#allocation3 + $0xb0] sm:$0xf] %v1026
    %1038 = vst.msk [vmem:[#allocation3 + $0xb8] sm:$0xf] %vm81, %v1021
    %v1039 = vld [vmem:[#allocation2 + $0x4] sm:$0xff]
    %v1040 = vld [vmem:[#allocation2 + $0xc] sm:$0xff]
    %v1041 = vld [vmem:[#allocation2 + $0x14] sm:$0xff]
    %v1045 = vcombine.low %v1039, %v1039
    %v1046 = vcombine.low %v1040, %v1040
    %v1047 = vcombine.low %v1041, %v1041
    %1048 = vrot.lane.b32.xlu0 %v1045, 110
    %v1049 = vpop.permute.xlu0 %1048
    %1050 = vrot.lane.b32.xlu0 %v1039, 110
    %v1051 = vpop.permute.xlu0 %1050
    %1052 = vrot.lane.b32.xlu0 %v1046, 110
    %v1053 = vpop.permute.xlu0 %1052
    %1054 = vrot.lane.b32.xlu0 %v1040, 110
    %v1055 = vpop.permute.xlu0 %1054
    %1056 = vrot.lane.b32.xlu0 %v1047, 110
    %v1057 = vpop.permute.xlu0 %1056
    %1058 = vrot.lane.b32.xlu0 %v1041, 110
    %v1059 = vpop.permute.xlu0 %1058
    %v1060 = vsel %vm324, %v1049, %v1051
    %v1061 = vsel %vm324, %v1051, %v1053
    %v1062 = vsel %vm324, %v1053, %v1055
    %v1063 = vsel %vm324, %v1055, %v1057
    %v1064 = vsel %vm324, %v1057, %v1059
    %1071 = vst [vmem:[#allocation3 + $0x90] sm:$0xf0] %v1060
    %1072 = vst [vmem:[#allocation3 + $0x98] sm:$0xf0] %v1061
    %1073 = vst [vmem:[#allocation3 + $0xa0] sm:$0xf0] %v1062
    %1074 = vst [vmem:[#allocation3 + $0xa8] sm:$0xf0] %v1063
    %1075 = vst [vmem:[#allocation3 + $0xb0] sm:$0xf0] %v1064
    %1076 = vst.msk [vmem:[#allocation3 + $0xb8] sm:$0xf0] %vm121, %v1059
    %v1077 = vld [vmem:[#allocation2 + $0x4] sm:$0xff]
    %v1078 = vld [vmem:[#allocation2 + $0xc] sm:$0xff]
    %v1079 = vld [vmem:[#allocation2 + $0x14] sm:$0xff]
    %v1083 = vcombine.high %v1077, %v1077
    %v1084 = vcombine.high %v1078, %v1078
    %v1085 = vcombine.high %v1079, %v1079
    %1086 = vrot.lane.b32.xlu0 %v1077, 109
    %v1087 = vpop.permute.xlu0 %1086
    %1088 = vrot.lane.b32.xlu0 %v1083, 109
    %v1089 = vpop.permute.xlu0 %1088
    %1090 = vrot.lane.b32.xlu0 %v1078, 109
    %v1091 = vpop.permute.xlu0 %1090
    %1092 = vrot.lane.b32.xlu0 %v1084, 109
    %v1093 = vpop.permute.xlu0 %1092
    %1094 = vrot.lane.b32.xlu0 %v1079, 109
    %v1095 = vpop.permute.xlu0 %1094
    %1096 = vrot.lane.b32.xlu0 %v1085, 109
    %v1097 = vpop.permute.xlu0 %1096
    %v1098 = vsel %vm363, %v1087, %v1089
    %v1099 = vsel %vm363, %v1089, %v1091
    %v1100 = vsel %vm363, %v1091, %v1093
    %v1101 = vsel %vm363, %v1093, %v1095
    %v1102 = vsel %vm363, %v1095, %v1097
    %1109 = vst [vmem:[#allocation3 + $0xc0] sm:$0xf] %v1098
    %1110 = vst [vmem:[#allocation3 + $0xc8] sm:$0xf] %v1099
    %1111 = vst [vmem:[#allocation3 + $0xd0] sm:$0xf] %v1100
    %1112 = vst [vmem:[#allocation3 + $0xd8] sm:$0xf] %v1101
    %1113 = vst [vmem:[#allocation3 + $0xe0] sm:$0xf] %v1102
    %1114 = vst.msk [vmem:[#allocation3 + $0xe8] sm:$0xf] %vm81, %v1097
    %v1115 = vld [vmem:[%s5] sm:$0xf]
    %v1116 = vld [vmem:[#allocation3] sm:$0xff]
    %v1117 = vld [vmem:[#allocation3 + $0x8] sm:$0xff]
    %v1118 = vld [vmem:[#allocation3 + $0x10] sm:$0xff]
    %v1119 = vld [vmem:[#allocation3 + $0x18] sm:$0xff]
    %v1120 = vld [vmem:[#allocation3 + $0x20] sm:$0xff]
    %v1121 = vld [vmem:[#allocation3 + $0x28] sm:$0xff]
    %v1122 = vld [vmem:[#allocation3 + $0x30] sm:$0xff]
    %v1123 = vld [vmem:[#allocation3 + $0x38] sm:$0xff]
    %v1124 = vld [vmem:[#allocation3 + $0x40] sm:$0xff]
    %v1125 = vld [vmem:[#allocation3 + $0x48] sm:$0xff]
    %v1126 = vld [vmem:[#allocation3 + $0x50] sm:$0xff]
    %v1127 = vld [vmem:[#allocation3 + $0x58] sm:$0xff]
    %v1128 = vld [vmem:[#allocation3 + $0x60] sm:$0xff]
    %v1129 = vld [vmem:[#allocation3 + $0x68] sm:$0xff]
    %v1130 = vld [vmem:[#allocation3 + $0x70] sm:$0xff]
    %v1131 = vld [vmem:[#allocation3 + $0x78] sm:$0xff]
    %v1132 = vld [vmem:[#allocation3 + $0x80] sm:$0xff]
    %v1133 = vld [vmem:[#allocation3 + $0x88] sm:$0xff]
    %v1134 = vld [vmem:[#allocation3 + $0x90] sm:$0xff]
    %v1135 = vld [vmem:[#allocation3 + $0x98] sm:$0xff]
    %v1136 = vld [vmem:[#allocation3 + $0xa0] sm:$0xff]
    %v1137 = vld [vmem:[#allocation3 + $0xa8] sm:$0xff]
    %v1138 = vld [vmem:[#allocation3 + $0xb0] sm:$0xff]
    %v1139 = vld [vmem:[#allocation3 + $0xb8] sm:$0xff]
    %v1140 = vld [vmem:[#allocation3 + $0xc0] sm:$0xf]
    %v1141 = vld [vmem:[#allocation3 + $0xc8] sm:$0xf]
    %v1142 = vld [vmem:[#allocation3 + $0xd0] sm:$0xf]
    %v1143 = vld [vmem:[#allocation3 + $0xd8] sm:$0xf]
    %v1144 = vld [vmem:[#allocation3 + $0xe0] sm:$0xf]
    %v1145 = vld [vmem:[#allocation3 + $0xe8] sm:$0xf]
    %v1147 = vsel %vm412, %v1115, 0
    %v1150 = vsel %vm416, %v1140, 0
    %v1153 = vsel %vm416, %v1141, 0
    %v1156 = vsel %vm416, %v1142, 0
    %v1159 = vsel %vm416, %v1143, 0
    %v1162 = vsel %vm416, %v1144, 0
    %v1165 = vsel %vm416, %v1145, 0
    %1167 = vmatprep.subr.mxu0 %v1117
    %1168 = vmatpush1.msra.mxu0 %v1116
    %1169 = vmatprep.subr.mxu0 %v1123
    %1170 = vmatpush1.msra.mxu0 %v1122
    %1171 = vmatprep.subr.mxu0 %v1129
    %1172 = vmatpush1.msra.mxu0 %v1128
    %1173 = vmatprep.subr.mxu0 %v1135
    %1174 = vmatpush1.msra.mxu0 %v1134
    %1175 = vmatprep.subr.mxu0 %v1153
    %1176 = vmatpush1.msra.mxu0 %v1150
    %1177 = vmatprep.subr.mxu0 0.0
    %1178 = vmatpush1.msra.mxu0 0.0
    %1179 = vmatprep.subr.mxu0 0.0
    %1180 = vmatpush1.msra.mxu0 0.0
    %1181 = vmatprep.subr.mxu0 0.0
    %1182 = vmatpush1.msra.mxu0 0.0
    %1183 = vmatprep.subr.mxu0 0.0
    %1184 = vmatpush1.msra.mxu0 0.0
    %1185 = vmatprep.subr.mxu0 0.0
    %1186 = vmatpush1.msra.mxu0 0.0
    %1187 = vmatprep.subr.mxu0 0.0
    %1188 = vmatpush1.msra.mxu0 0.0
    %1189 = vmatprep.subr.mxu0 0.0
    %1190 = vmatpush1.msra.mxu0 0.0
    %1191 = vmatprep.subr.mxu0 0.0
    %1192 = vmatpush1.msra.mxu0 0.0
    %1193 = vmatprep.subr.mxu0 0.0
    %1194 = vmatpush1.msra.mxu0 0.0
    %1195 = vmatprep.subr.mxu0 0.0
    %1196 = vmatpush1.msra.mxu0 0.0
    %1197 = vmatprep.subr.mxu0 0.0
    %1198 = vmatpush1.msra.mxu0 0.0
    %1199 = vmatprep.subr.mxu0 0.0
    %1200 = vmatpush1.msra.mxu0 0.0
    %1201 = vmatprep.subr.mxu0 0.0
    %1202 = vmatpush1.msra.mxu0 0.0
    %1203 = vmatprep.subr.mxu0 0.0
    %1204 = vmatpush1.msra.mxu0 0.0
    %1205 = vmatprep.subr.mxu0 0.0
    %1206 = vmatpush1.msra.mxu0 0.0
    %1207 = vmatprep.subr.mxu0 0.0
    %1208 = vmatpush1.msra.mxu0 0.0
    %1209 = vmatprep.subr.mxu0 0.0
    %1210 = vmatpush1.msra.mxu0 0.0
    %1211 = vmatprep.subr.mxu0 0.0
    %1212 = vmatpush1.msra.mxu0 0.0
    %1213 = vmatprep.subr.mxu0 0.0
    %1214 = vmatpush1.msra.mxu0 0.0
    %1215 = vmatprep.subr.mxu0 0.0
    %1216 = vmatpush1.msra.mxu0 0.0
    %1217 = vmatprep.subr.mxu0 0.0
    %1218 = vmatpush1.msra.mxu0 0.0
    %1219 = vmatprep.subr.mxu0 0.0
    %1220 = vmatpush1.msra.mxu0 0.0
    %1221 = vmatprep.subr.mxu0 0.0
    %1222 = vmatpush1.msra.mxu0 0.0
    %1223 = vmatprep.subr.mxu0 0.0
    %1224 = vmatpush1.msra.mxu0 0.0
    %1225 = vmatprep.subr.mxu0 0.0
    %1226 = vmatpush1.msra.mxu0 0.0
    %1227 = vmatprep.subr.mxu0 0.0
    %1228 = vmatpush1.msra.mxu0 0.0
    %1229 = vmatprep.subr.mxu0 0.0
    %1230 = vmatpush1.msra.mxu0 0.0
    %1231 = vmatprep.mubr.f32.mxu0 0.0
    %1232 = vmatmul.mubr.f32.gmra.mrb[0].mxu0 %v1147
    %v1233 = vpop.f32.mrb[0].mxu0
    %v1234 = vadd.f32 0.0, %v1233
    %v1235 = vpop.f32.mrb[0].mxu0
    %v1236 = vadd.f32 0.0, %v1235
    %1237 = vdwg.mxu0
    %1238 = vmatprep.subr.mxu0 %v1119
    %1239 = vmatpush1.msra.mxu0 %v1118
    %1240 = vmatprep.subr.mxu0 %v1125
    %1241 = vmatpush1.msra.mxu0 %v1124
    %1242 = vmatprep.subr.mxu0 %v1131
    %1243 = vmatpush1.msra.mxu0 %v1130
    %1244 = vmatprep.subr.mxu0 %v1137
    %1245 = vmatpush1.msra.mxu0 %v1136
    %1246 = vmatprep.subr.mxu0 %v1159
    %1247 = vmatpush1.msra.mxu0 %v1156
    %1248 = vmatprep.subr.mxu0 0.0
    %1249 = vmatpush1.msra.mxu0 0.0
    %1250 = vmatprep.subr.mxu0 0.0
    %1251 = vmatpush1.msra.mxu0 0.0
    %1252 = vmatprep.subr.mxu0 0.0
    %1253 = vmatpush1.msra.mxu0 0.0
    %1254 = vmatprep.subr.mxu0 0.0
    %1255 = vmatpush1.msra.mxu0 0.0
    %1256 = vmatprep.subr.mxu0 0.0
    %1257 = vmatpush1.msra.mxu0 0.0
    %1258 = vmatprep.subr.mxu0 0.0
    %1259 = vmatpush1.msra.mxu0 0.0
    %1260 = vmatprep.subr.mxu0 0.0
    %1261 = vmatpush1.msra.mxu0 0.0
    %1262 = vmatprep.subr.mxu0 0.0
    %1263 = vmatpush1.msra.mxu0 0.0
    %1264 = vmatprep.subr.mxu0 0.0
    %1265 = vmatpush1.msra.mxu0 0.0
    %1266 = vmatprep.subr.mxu0 0.0
    %1267 = vmatpush1.msra.mxu0 0.0
    %1268 = vmatprep.subr.mxu0 0.0
    %1269 = vmatpush1.msra.mxu0 0.0
    %1270 = vmatprep.subr.mxu0 0.0
    %1271 = vmatpush1.msra.mxu0 0.0
    %1272 = vmatprep.subr.mxu0 0.0
    %1273 = vmatpush1.msra.mxu0 0.0
    %1274 = vmatprep.subr.mxu0 0.0
    %1275 = vmatpush1.msra.mxu0 0.0
    %1276 = vmatprep.subr.mxu0 0.0
    %1277 = vmatpush1.msra.mxu0 0.0
    %1278 = vmatprep.subr.mxu0 0.0
    %1279 = vmatpush1.msra.mxu0 0.0
    %1280 = vmatprep.subr.mxu0 0.0
    %1281 = vmatpush1.msra.mxu0 0.0
    %1282 = vmatprep.subr.mxu0 0.0
    %1283 = vmatpush1.msra.mxu0 0.0
    %1284 = vmatprep.subr.mxu0 0.0
    %1285 = vmatpush1.msra.mxu0 0.0
    %1286 = vmatprep.subr.mxu0 0.0
    %1287 = vmatpush1.msra.mxu0 0.0
    %1288 = vmatprep.subr.mxu0 0.0
    %1289 = vmatpush1.msra.mxu0 0.0
    %1290 = vmatprep.subr.mxu0 0.0
    %1291 = vmatpush1.msra.mxu0 0.0
    %1292 = vmatprep.subr.mxu0 0.0
    %1293 = vmatpush1.msra.mxu0 0.0
    %1294 = vmatprep.subr.mxu0 0.0
    %1295 = vmatpush1.msra.mxu0 0.0
    %1296 = vmatprep.subr.mxu0 0.0
    %1297 = vmatpush1.msra.mxu0 0.0
    %1298 = vmatprep.subr.mxu0 0.0
    %1299 = vmatpush1.msra.mxu0 0.0
    %1300 = vmatprep.subr.mxu0 0.0
    %1301 = vmatpush1.msra.mxu0 0.0
    %1302 = vmatprep.mubr.f32.mxu0 0.0
    %1303 = vmatmul.mubr.f32.gmra.mrb[0].mxu0 %v1147
    %v1304 = vpop.f32.mrb[0].mxu0
    %v1305 = vadd.f32 0.0, %v1304
    %v1306 = vpop.f32.mrb[0].mxu0
    %v1307 = vadd.f32 0.0, %v1306
    %1308 = vdwg.mxu0
    %1309 = vmatprep.subr.mxu0 %v1121
    %1310 = vmatpush1.msra.mxu0 %v1120
    %1311 = vmatprep.subr.mxu0 %v1127
    %1312 = vmatpush1.msra.mxu0 %v1126
    %1313 = vmatprep.subr.mxu0 %v1133
    %1314 = vmatpush1.msra.mxu0 %v1132
    %1315 = vmatprep.subr.mxu0 %v1139
    %1316 = vmatpush1.msra.mxu0 %v1138
    %1317 = vmatprep.subr.mxu0 %v1165
    %1318 = vmatpush1.msra.mxu0 %v1162
    %1319 = vmatprep.subr.mxu0 0.0
    %1320 = vmatpush1.msra.mxu0 0.0
    %1321 = vmatprep.subr.mxu0 0.0
    %1322 = vmatpush1.msra.mxu0 0.0
    %1323 = vmatprep.subr.mxu0 0.0
    %1324 = vmatpush1.msra.mxu0 0.0
    %1325 = vmatprep.subr.mxu0 0.0
    %1326 = vmatpush1.msra.mxu0 0.0
    %1327 = vmatprep.subr.mxu0 0.0
    %1328 = vmatpush1.msra.mxu0 0.0
    %1329 = vmatprep.subr.mxu0 0.0
    %1330 = vmatpush1.msra.mxu0 0.0
    %1331 = vmatprep.subr.mxu0 0.0
    %1332 = vmatpush1.msra.mxu0 0.0
    %1333 = vmatprep.subr.mxu0 0.0
    %1334 = vmatpush1.msra.mxu0 0.0
    %1335 = vmatprep.subr.mxu0 0.0
    %1336 = vmatpush1.msra.mxu0 0.0
    %1337 = vmatprep.subr.mxu0 0.0
    %1338 = vmatpush1.msra.mxu0 0.0
    %1339 = vmatprep.subr.mxu0 0.0
    %1340 = vmatpush1.msra.mxu0 0.0
    %1341 = vmatprep.subr.mxu0 0.0
    %1342 = vmatpush1.msra.mxu0 0.0
    %1343 = vmatprep.subr.mxu0 0.0
    %1344 = vmatpush1.msra.mxu0 0.0
    %1345 = vmatprep.subr.mxu0 0.0
    %1346 = vmatpush1.msra.mxu0 0.0
    %1347 = vmatprep.subr.mxu0 0.0
    %1348 = vmatpush1.msra.mxu0 0.0
    %1349 = vmatprep.subr.mxu0 0.0
    %1350 = vmatpush1.msra.mxu0 0.0
    %1351 = vmatprep.subr.mxu0 0.0
    %1352 = vmatpush1.msra.mxu0 0.0
    %1353 = vmatprep.subr.mxu0 0.0
    %1354 = vmatpush1.msra.mxu0 0.0
    %1355 = vmatprep.subr.mxu0 0.0
    %1356 = vmatpush1.msra.mxu0 0.0
    %1357 = vmatprep.subr.mxu0 0.0
    %1358 = vmatpush1.msra.mxu0 0.0
    %1359 = vmatprep.subr.mxu0 0.0
    %1360 = vmatpush1.msra.mxu0 0.0
    %1361 = vmatprep.subr.mxu0 0.0
    %1362 = vmatpush1.msra.mxu0 0.0
    %1363 = vmatprep.subr.mxu0 0.0
    %1364 = vmatpush1.msra.mxu0 0.0
    %1365 = vmatprep.subr.mxu0 0.0
    %1366 = vmatpush1.msra.mxu0 0.0
    %1367 = vmatprep.subr.mxu0 0.0
    %1368 = vmatpush1.msra.mxu0 0.0
    %1369 = vmatprep.subr.mxu0 0.0
    %1370 = vmatpush1.msra.mxu0 0.0
    %1371 = vmatprep.subr.mxu0 0.0
    %1372 = vmatpush1.msra.mxu0 0.0
    %1373 = vmatprep.mubr.f32.mxu0 0.0
    %1374 = vmatmul.mubr.f32.gmra.mrb[0].mxu0 %v1147
    %v1375 = vpop.f32.mrb[0].mxu0
    %v1376 = vadd.f32 0.0, %v1375
    %v1377 = vpop.f32.mrb[0].mxu0
    %v1378 = vadd.f32 0.0, %v1377
    %1379 = vdwg.mxu0
    %v1380 = vmul.f32 %v1234, %v652
    %v1381 = vmul.f32 %v1236, %v656
    %v1382 = vmul.f32 %v1305, %v660
    %v1383 = vmul.f32 %v1307, %v664
    %v1384 = vmul.f32 %v1376, %v668
    %v1385 = vmul.f32 %v1378, %v672
    %v1386 = vsel %vm416, %v1380, 0.0
    %v1387 = vsel %vm416, %v1381, 0.0
    %v1388 = vadd.f32 %v1386, %v1387
    %v1389 = vsel %vm416, %v1382, 0.0
    %v1390 = vadd.f32 %v1388, %v1389
    %v1391 = vsel %vm416, %v1383, 0.0
    %v1392 = vadd.f32 %v1390, %v1391
    %v1393 = vsel %vm416, %v1384, 0.0
    %v1394 = vadd.f32 %v1392, %v1393
    %v1395 = vsel %vm81, %v1385, 0.0
    %v1396 = vadd.f32 %v1394, %v1395
    %1397 = vadd.xlane.f32.xlu0 %v1396
    %v1398 = vpop.xlane.xlu0 %1397
    %v1399 = vmul.f32 %v1380, %v1234
    %v1400 = vmul.f32 %v1381, %v1236
    %v1401 = vmul.f32 %v1382, %v1305
    %v1402 = vmul.f32 %v1383, %v1307
    %v1403 = vmul.f32 %v1384, %v1376
    %v1404 = vmul.f32 %v1385, %v1378
    %v1405 = vsel %vm416, %v1399, 0.0
    %v1406 = vsel %vm416, %v1400, 0.0
    %v1407 = vadd.f32 %v1405, %v1406
    %v1408 = vsel %vm416, %v1401, 0.0
    %v1409 = vadd.f32 %v1407, %v1408
    %v1410 = vsel %vm416, %v1402, 0.0
    %v1411 = vadd.f32 %v1409, %v1410
    %v1412 = vsel %vm416, %v1403, 0.0
    %v1413 = vadd.f32 %v1411, %v1412
    %v1414 = vsel %vm81, %v1404, 0.0
    %v1415 = vadd.f32 %v1413, %v1414
    %1416 = vadd.xlane.f32.xlu0 %v1415
    %v1417 = vpop.xlane.xlu0 %1416
    %v1418 = vmul.f32 %v1398, 0.001953125
    %v1419 = vmul.f32 %v1417, 0.001953125
    %v1420 = vmul.f32 %v1418, %v1418
    %v1421 = vsub.f32 %v1419, %v1420
    %v1422 = vmax.f32 %v1421, 0.0
    %v1423 = vadd.f32 %v1422, 1e-05
    %v1424 = vrsqrt.pop %v1423
    %v1425 = vld [vmem:[%s6] sm:$0xf]
    %v1426 = vmul.f32 %v1424, %v1425
    %v1427 = vsub.f32 %v1234, %v1418
    %v1428 = vsub.f32 %v1236, %v1418
    %v1429 = vsub.f32 %v1305, %v1418
    %v1430 = vsub.f32 %v1307, %v1418
    %v1431 = vsub.f32 %v1376, %v1418
    %v1432 = vsub.f32 %v1378, %v1418
    %1434 = vset.pattern.permute.xlu0 0
    %1435 = vperm.xlu0 %1434, %v1426
    %v1436 = vpop.permute.xlu0 %1435
    %v1438 = vmul.f32 %v1427, %v1436
    %v1439 = vmul.f32 %v1428, %v1436
    %v1440 = vmul.f32 %v1429, %v1436
    %v1441 = vmul.f32 %v1430, %v1436
    %v1442 = vmul.f32 %v1431, %v1436
    %v1443 = vmul.f32 %v1432, %v1436
    %v1444 = vld [vmem:[%s7] sm:$0xf]
    %1446 = vset.pattern.permute.xlu0 0
    %1447 = vperm.xlu0 %1446, %v1444
    %v1448 = vpop.permute.xlu0 %1447
    %v1450 = vadd.f32 %v1438, %v1448
    %v1451 = vadd.f32 %v1439, %v1448
    %v1452 = vadd.f32 %v1440, %v1448
    %v1453 = vadd.f32 %v1441, %v1448
    %v1454 = vadd.f32 %v1442, %v1448
    %v1455 = vadd.f32 %v1443, %v1448
    %v1456 = vld [vmem:[#allocation4 + $0x4] sm:$0xff]
    %v1457 = vld [vmem:[#allocation4 + $0xc] sm:$0xff]
    %v1458 = vld [vmem:[#allocation4 + $0x14] sm:$0xff]
    %v1462 = vcombine.high %v1456, %v1456
    %v1463 = vcombine.high %v1457, %v1457
    %v1464 = vcombine.high %v1458, %v1458
    %v1468 = vadd.f32 %v1450, %v1456
    %v1469 = vadd.f32 %v1451, %v1462
    %v1470 = vadd.f32 %v1452, %v1457
    %v1471 = vadd.f32 %v1453, %v1463
    %v1472 = vadd.f32 %v1454, %v1458
    %v1473 = vadd.f32 %v1455, %v1464
    %v1474 = vmax.f32 %v1468, 0.0
    %v1475 = vmax.f32 %v1469, 0.0
    %v1476 = vmax.f32 %v1470, 0.0
    %v1477 = vmax.f32 %v1471, 0.0
    %v1478 = vmax.f32 %v1472, 0.0
    %v1479 = vmax.f32 %v1473, 0.0
    %v1486 = vcombine.low %v1474, %v1475
    %v1487 = vcombine.low %v1476, %v1477
    %v1488 = vcombine.low %v1478, %v1479
    %1492 = vst [vmem:[#allocation7] sm:$0xff] %v1486
    %1493 = vst [vmem:[#allocation7 + $0x8] sm:$0xff] %v1487
    %1494 = vst.msk [vmem:[#allocation7 + $0x10] sm:$0xff] %vm785, %v1488
    // Predicated region
    $region38: #{tpu_custom_call.1} parent=1 // pred_check
      _
    $region39: #{tpu_custom_call.1} parent=1 // pred_check_branch
      %1496 = sbr.rel (0) target = $region41
    $region40: #{tpu_custom_call.1} parent=1 // pred_region
      %s1498 = ssub.s32 384, 384
      %1499 = vsyncadd [#allocation6], %s1498
      %s1501 = sshll.u32 [#allocation7], 4
      %s1502 = int_to_ptr.vmem [resolvable:$true] %s1501
      %1504 = dma.vmem_to_hbm [thread:$0]  %s1502, 384, %s8, [#allocation6]
    $region41: #{tpu_custom_call.1} parent=1 // pred_fallthru
      _
    // Predicated region
    $region42: #{tpu_custom_call.1} parent=1 // pred_check
      _
    $region43: #{tpu_custom_call.1} parent=1 // pred_check_branch
      %1506 = sbr.rel (0) target = $region45
    $region44: #{tpu_custom_call.1} parent=1 // pred_region
      %1507 = dma.done [#allocation6], 384
    $region45: #{tpu_custom_call.1} parent=1 // pred_fallthru
      _
    %1508 = vsyncpa [#allocation5], 1
    %1509 = vsyncpa [#allocation6], 1

</llo_original>
